<compile_context>
chip_gen: v7x
topology: tpu7x:2x2x1
jax: 0.10.0
libtpu: 0.0.40
codegen_flags: <defaults>
</compile_context>

<pallas_src>
import functools

import jax
import jax.numpy as jnp
from jax.experimental import pallas as pl
from jax.experimental.pallas import tpu as pltpu

NEG_SLOPE = 0.2      # GATv2Conv default negative_slope
NEG_INF = -1e30
LANES = 128          # lane width of the packed buffers


def _round_up(v, m):
    return -(-v // m) * m


# ---------------------------------------------------------------------------
# Host-side packing: params -> one [RP, 128] buffer, graph data -> [G, RD, 128].
# ---------------------------------------------------------------------------
def pack_params(gat_params, fc_params):
    """Pack all 29 learnable tensors into one f32 [RP, 128] buffer (single DMA per call).

    Row offsets are 8-aligned so every in-kernel slice is sublane-aligned. Kept f32:
    the buffer is DMA'd only once per call (constant index_map) and bias / att / We
    entries feed f32 elementwise math (no bf16 VPU on v5e); weights are cast to bf16
    at the dot sites instead.
    """
    entries = []
    for l in range(3):
        Wl, bl, Wr, br, We, att, b_out = gat_params[l]
        entries += [
            (f"g{l}_Wl", Wl), (f"g{l}_bl", bl),     # lin_l
            (f"g{l}_Wr", Wr), (f"g{l}_br", br),     # lin_r
            (f"g{l}_We", We),                       # lin_edge (edge_dim=1, no bias)
            (f"g{l}_att", att),                     # attention vector
            (f"g{l}_bo", b_out),                    # conv output bias
        ]
    for name, arr in zip(("W1", "b1", "W2", "b2", "W3", "b3", "W4", "b4"), fc_params):
        entries.append((name, arr))

    layout, row = {}, 0
    for name, arr in entries:
        r, c = arr.shape
        assert c <= LANES
        layout[name] = (row, r, c)
        row += _round_up(r, 8)
    total_rows = _round_up(row, 8)

    packed = jnp.zeros((total_rows, LANES), jnp.float32)
    for name, arr in entries:
        r0, r, c = layout[name]
        packed = packed.at[r0:r0 + r, :c].set(arr.astype(jnp.float32))
    return packed, layout


def pack_inputs(x, adj, ea, pool):
    """Pack the four per-graph-block inputs into one [G, RD, 128] buffer (one DMA stream)."""
    entries = [("x", x), ("adj", adj), ("ea", ea), ("pool", pool)]
    layout, row = {}, 0
    for name, arr in entries:
        r, c = arr.shape[1], arr.shape[2]
        assert c <= LANES
        layout[name] = (row, r, c)
        row += _round_up(r, 8)
    total_rows = _round_up(row, 8)

    G = x.shape[0]
    packed = jnp.zeros((G, total_rows, LANES), jnp.float32)
    for name, arr in entries:
        r0, r, c = layout[name]
        packed = packed.at[:, r0:r0 + r, :c].set(arr.astype(jnp.float32))
    return packed, layout


# ---------------------------------------------------------------------------
# Kernel
# ---------------------------------------------------------------------------
def _bdot(a, b):
    # bf16 MXU operands, f32 accumulation (halves MXU passes on v6e/v7x).
    return jnp.dot(a.astype(jnp.bfloat16), b.astype(jnp.bfloat16),
                   preferred_element_type=jnp.float32)


def _gat_layer(h, mask, ea3, Wl, bl, Wr, br, We, att, b_out):
    """GATv2Conv (heads=1, edge_dim=1) + fused F.relu, dense formulation."""
    xl = _bdot(h, Wl) + bl                               # [N, C] source proj (lin_l)
    xr = _bdot(h, Wr) + br                               # [N, C] target proj (lin_r)
    e3 = ea3 * We[None, :, :]                            # [N, N, C] edge proj (lin_edge)
    s = xl[None, :, :] + xr[:, None, :] + e3             # [N(tgt), N(src), C]
    s = jnp.where(s >= 0.0, s, NEG_SLOPE * s)            # leaky_relu(0.2)
    score = jnp.sum(s * att[None, :, :], axis=-1)        # [N, N] attention logits
    score = jnp.where(mask, score, NEG_INF)
    score = score - jnp.max(score, axis=1, keepdims=True)
    p = jnp.where(mask, jnp.exp(score), 0.0)
    denom = jnp.maximum(jnp.sum(p, axis=1, keepdims=True), 1e-30)   # NaN guard
    # approx reciprocal runs on the EUP slot; use approx=False for bit-parity with torch.
    alpha = p * pl.reciprocal(denom, approx=True)        # softmax over source nodes
    out = _bdot(alpha, xl) + b_out                       # aggregate messages + conv bias
    return jnp.maximum(out, 0.0)                         # fused F.relu


def dqn_kernel(data_ref, p_ref, out_ref, *, d_layout, p_layout):
    def pget(name, full_lanes=False):
        r0, r, c = p_layout[name]
        return p_ref[r0:r0 + r, :] if full_lanes else p_ref[r0:r0 + r, :c]

    def dget(name):
        r0, r, c = d_layout[name]
        return data_ref[0, r0:r0 + r, :c]

    h = dget("x")                                        # [N, F] node features
    adj = dget("adj")                                    # [N, N]
    ea = dget("ea")                                      # [N, N] edge scalars
    pool = dget("pool")                                  # [B, N] mean-pool matrix

    mask = adj > 0.0                                     # hoisted once, reused by all layers
    ea3 = ea[:, :, None]                                 # hoisted [N,N]->[N,N,1] relayout

    for l in range(3):                                   # three GATv2 layers + fused relu
        h = _gat_layer(h, mask, ea3,
                       pget(f"g{l}_Wl"), pget(f"g{l}_bl"),
                       pget(f"g{l}_Wr"), pget(f"g{l}_br"),
                       pget(f"g{l}_We"), pget(f"g{l}_att"), pget(f"g{l}_bo"))

    pooled = _bdot(pool, h)                              # global_mean_pool -> [B, C]

    # TODO(synk): nn.Dropout(0.4) layers are identity (eval-mode forward only).
    z = jnp.maximum(_bdot(pooled, pget("W1")) + pget("b1"), 0.0)
    z = jnp.maximum(_bdot(z, pget("W2")) + pget("b2"), 0.0)
    z = jnp.maximum(_bdot(z, pget("W3")) + pget("b3"), 0.0)
    # Lane-dense store: W4/b4 are zero-padded to 128 lanes -> full [B, 128] unmasked vst.
    out_ref[0] = _bdot(z, pget("W4", full_lanes=True)) + pget("b4", full_lanes=True)


def dqn_forward(data, packed_params, d_layout, p_layout, n_actions):
    G, RD, _ = data.shape
    RP = packed_params.shape[0]
    B = d_layout["pool"][1]
    kernel = functools.partial(dqn_kernel, d_layout=d_layout, p_layout=p_layout)
    out_padded = pl.pallas_call(
        kernel,
        out_shape=jax.ShapeDtypeStruct((G, B, LANES), jnp.float32),
        grid=(G,),
        in_specs=[
            pl.BlockSpec((1, RD, LANES), lambda g: (g, 0, 0)),   # per-step graph block
            pl.BlockSpec((RP, LANES), lambda g: (0, 0)),         # params: constant -> resident
        ],
        out_specs=pl.BlockSpec((1, B, LANES), lambda g: (g, 0, 0)),
        compiler_params=pltpu.CompilerParams(
            dimension_semantics=("parallel",),        # v7x: shard graph blocks over both TCs
            vmem_limit_bytes=32 * 1024 * 1024,        # explicit; safe on v7x's 64 MiB VMEM
        ),
    )(data, packed_params)
    return out_padded[:, :, :n_actions]               # drop lane padding host-side


# ---------------------------------------------------------------------------
# Host-side helpers (parameter init + dense graph construction)
# ---------------------------------------------------------------------------
def init_params(key, state_dims, gcn_dims, fc1_dims, fc2_dims, n_actions):
    keys = iter(jax.random.split(key, 64))

    def w(shape):
        return jax.random.normal(next(keys), shape, jnp.float32) * 0.1

    gat = []
    in_d = state_dims
    for _ in range(3):
        gat.append((
            w((in_d, gcn_dims)), w((1, gcn_dims)),   # lin_l: Wl, bl
            w((in_d, gcn_dims)), w((1, gcn_dims)),   # lin_r: Wr, br
            w((1, gcn_dims)),                        # lin_edge (edge_dim=1, no bias)
            w((1, gcn_dims)),                        # att vector
            w((1, gcn_dims)),                        # conv output bias
        ))
        in_d = gcn_dims
    fc = [
        w((gcn_dims, fc1_dims)), w((1, fc1_dims)),
        w((fc1_dims, fc2_dims)), w((1, fc2_dims)),
        w((fc2_dims, fc2_dims // 2)), w((1, fc2_dims // 2)),
        w((fc2_dims // 2, n_actions)), w((1, n_actions)),
    ]
    return gat, fc


def build_dense_graph(edge_index, edge_weight, num_nodes, batch, num_graphs):
    src, dst = edge_index[0], edge_index[1]
    adj = jnp.zeros((num_nodes, num_nodes), jnp.float32).at[dst, src].set(1.0)
    ea = jnp.zeros((num_nodes, num_nodes), jnp.float32).at[dst, src].set(edge_weight)
    # self loops with fill_value='mean' (mean of incoming edge weights per target node)
    deg = jnp.zeros((num_nodes,), jnp.float32).at[dst].add(1.0)
    ew_sum = jnp.zeros((num_nodes,), jnp.float32).at[dst].add(edge_weight)
    loop_val = jnp.where(deg > 0, ew_sum / jnp.maximum(deg, 1.0), 0.0)
    ar = jnp.arange(num_nodes)
    adj = adj.at[ar, ar].set(1.0)
    ea = ea.at[ar, ar].set(loop_val)
    # global_mean_pool matrix
    onehot = (batch[None, :] == jnp.arange(num_graphs)[:, None]).astype(jnp.float32)
    pool = onehot / jnp.sum(onehot, axis=1, keepdims=True)
    return adj, ea, pool


if __name__ == "__main__":
    # module hyper-params (small)
    state_dims, gcn_dims, fc1_dims, fc2_dims, n_actions = 4, 32, 32, 32, 4
    N, B, G = 8, 2, 8       # 8 nodes / 2 graphs per block, 8 graph-blocks batched per call

    key = jax.random.PRNGKey(0)
    k_x, k_w, k_p = jax.random.split(key, 3)

    # node features for every block
    x = jax.random.normal(k_x, (G, N, state_dims), jnp.float32)

    # bidirectional ring edges inside each of the 2 graphs of a block
    src, dst = [], []
    for off in (0, 4):
        for i in range(4):
            j = (i + 1) % 4
            src += [off + i, off + j]
            dst += [off + j, off + i]
    edge_index = jnp.array([src, dst], dtype=jnp.int32)          # [2, 16]
    edge_weight = jax.random.uniform(k_w, (G, edge_index.shape[1]), jnp.float32)
    batch = jnp.array([0, 0, 0, 0, 1, 1, 1, 1], dtype=jnp.int32)

    adjs, eas, pools = [], [], []
    for g in range(G):
        a, e, p = build_dense_graph(edge_index, edge_weight[g], N, batch, B)
        adjs.append(a); eas.append(e); pools.append(p)
    adj, ea, pool = jnp.stack(adjs), jnp.stack(eas), jnp.stack(pools)

    gat_params, fc_params = init_params(k_p, state_dims, gcn_dims,
                                        fc1_dims, fc2_dims, n_actions)
    packed_p, p_layout = pack_params(gat_params, fc_params)
    data, d_layout = pack_inputs(x, adj, ea, pool)

    actions = dqn_forward(data, packed_p, d_layout, p_layout, n_actions)
    actions = jax.block_until_ready(actions)
    assert actions.shape == (G, B, n_actions)
    print("KERNEL_OK")
</pallas_src>

<mosaic_0001>
module attributes {stable_mosaic.version = 11 : i64} {
  func.func @dqn_kernel(%arg0: i32, %arg1: memref<1x32x128xf32, #tpu.memory_space<vmem>>, %arg2: memref<408x128xf32, #tpu.memory_space<vmem>>, %arg3: memref<1x2x128xf32, #tpu.memory_space<vmem>>) attributes {dimension_semantics = [#tpu.dimension_semantics<parallel>], iteration_bounds = array<i64: 8>, scalar_prefetch = 0 : i64, scratch_operands = 0 : i64, tpu.core_type = #tpu.core_type<tc>, window_params = [{transform_indices = @transform_0, window_bounds = array<i64: 1, 32, 128>}, {pipeline_mode = #tpu.pipeline_mode<synchronous>, transform_indices = @transform_1, window_bounds = array<i64: 408, 128>}, {transform_indices = @transform_2, window_bounds = array<i64: 1, 2, 128>}]} {
    %c0 = arith.constant 0 : index
    %c0_0 = arith.constant 0 : index
    %c0_1 = arith.constant 0 : index
    %0 = vector.load %arg1[%c0, %c0_0, %c0_1] : memref<1x32x128xf32, #tpu.memory_space<vmem>>, vector<1x8x4xf32>
    %1 = vector.shape_cast %0 : vector<1x8x4xf32> to vector<8x4xf32>
    %c0_2 = arith.constant 0 : index
    %c8 = arith.constant 8 : index
    %c0_3 = arith.constant 0 : index
    %2 = vector.load %arg1[%c0_2, %c8, %c0_3] : memref<1x32x128xf32, #tpu.memory_space<vmem>>, vector<1x8x8xf32>
    %3 = vector.shape_cast %2 : vector<1x8x8xf32> to vector<8x8xf32>
    %c0_4 = arith.constant 0 : index
    %c16 = arith.constant 16 : index
    %c0_5 = arith.constant 0 : index
    %4 = vector.load %arg1[%c0_4, %c16, %c0_5] : memref<1x32x128xf32, #tpu.memory_space<vmem>>, vector<1x8x8xf32>
    %5 = vector.shape_cast %4 : vector<1x8x8xf32> to vector<8x8xf32>
    %c0_6 = arith.constant 0 : index
    %c24 = arith.constant 24 : index
    %c0_7 = arith.constant 0 : index
    %6 = vector.load %arg1[%c0_6, %c24, %c0_7] : memref<1x32x128xf32, #tpu.memory_space<vmem>>, vector<1x2x8xf32>
    %7 = vector.shape_cast %6 : vector<1x2x8xf32> to vector<2x8xf32>
    %cst = arith.constant 0.000000e+00 : f32
    %8 = vector.broadcast %cst : f32 to vector<8x8xf32>
    %9 = arith.cmpf ogt, %3, %8 : vector<8x8xf32>
    %10 = vector.shape_cast %5 : vector<8x8xf32> to vector<8x8x1xf32>
    %c0_8 = arith.constant 0 : index
    %c0_9 = arith.constant 0 : index
    %11 = vector.load %arg2[%c0_8, %c0_9] : memref<408x128xf32, #tpu.memory_space<vmem>>, vector<4x32xf32>
    %c8_10 = arith.constant 8 : index
    %c0_11 = arith.constant 0 : index
    %12 = vector.load %arg2[%c8_10, %c0_11] : memref<408x128xf32, #tpu.memory_space<vmem>>, vector<1x32xf32>
    %c16_12 = arith.constant 16 : index
    %c0_13 = arith.constant 0 : index
    %13 = vector.load %arg2[%c16_12, %c0_13] : memref<408x128xf32, #tpu.memory_space<vmem>>, vector<4x32xf32>
    %c24_14 = arith.constant 24 : index
    %c0_15 = arith.constant 0 : index
    %14 = vector.load %arg2[%c24_14, %c0_15] : memref<408x128xf32, #tpu.memory_space<vmem>>, vector<1x32xf32>
    %c32 = arith.constant 32 : index
    %c0_16 = arith.constant 0 : index
    %15 = vector.load %arg2[%c32, %c0_16] : memref<408x128xf32, #tpu.memory_space<vmem>>, vector<1x32xf32>
    %c40 = arith.constant 40 : index
    %c0_17 = arith.constant 0 : index
    %16 = vector.load %arg2[%c40, %c0_17] : memref<408x128xf32, #tpu.memory_space<vmem>>, vector<1x32xf32>
    %c48 = arith.constant 48 : index
    %c0_18 = arith.constant 0 : index
    %17 = vector.load %arg2[%c48, %c0_18] : memref<408x128xf32, #tpu.memory_space<vmem>>, vector<1x32xf32>
    %18 = arith.truncf %1 : vector<8x4xf32> to vector<8x4xbf16>
    %19 = arith.truncf %11 : vector<4x32xf32> to vector<4x32xbf16>
    %cst_19 = arith.constant dense<0.000000e+00> : vector<8x32xf32>
    %20 = tpu.matmul %18, %19, %cst_19 {dimension_numbers = #tpu.dot_dimension_numbers<[1], [0], [0], [1], [0, 0, 1, 1], [], []>} : vector<8x4xbf16>, vector<4x32xbf16>, vector<8x32xf32> -> vector<8x32xf32>
    %21 = vector.broadcast %12 : vector<1x32xf32> to vector<8x32xf32>
    %22 = arith.addf %20, %21 : vector<8x32xf32>
    %23 = arith.truncf %1 : vector<8x4xf32> to vector<8x4xbf16>
    %24 = arith.truncf %13 : vector<4x32xf32> to vector<4x32xbf16>
    %cst_20 = arith.constant dense<0.000000e+00> : vector<8x32xf32>
    %25 = tpu.matmul %23, %24, %cst_20 {dimension_numbers = #tpu.dot_dimension_numbers<[1], [0], [0], [1], [0, 0, 1, 1], [], []>} : vector<8x4xbf16>, vector<4x32xbf16>, vector<8x32xf32> -> vector<8x32xf32>
    %26 = vector.broadcast %14 : vector<1x32xf32> to vector<8x32xf32>
    %27 = arith.addf %25, %26 : vector<8x32xf32>
    %28 = vector.shape_cast %15 : vector<1x32xf32> to vector<1x1x32xf32>
    %29 = vector.broadcast %10 : vector<8x8x1xf32> to vector<8x8x32xf32>
    %30 = vector.broadcast %28 : vector<1x1x32xf32> to vector<8x8x32xf32>
    %31 = arith.mulf %29, %30 : vector<8x8x32xf32>
    %32 = vector.shape_cast %22 : vector<8x32xf32> to vector<1x8x32xf32>
    %33 = vector.shape_cast %27 : vector<8x32xf32> to vector<8x1x32xf32>
    %34 = vector.broadcast %32 : vector<1x8x32xf32> to vector<8x8x32xf32>
    %35 = vector.broadcast %33 : vector<8x1x32xf32> to vector<8x8x32xf32>
    %36 = arith.addf %34, %35 : vector<8x8x32xf32>
    %37 = arith.addf %36, %31 : vector<8x8x32xf32>
    %cst_21 = arith.constant 0.000000e+00 : f32
    %38 = vector.broadcast %cst_21 : f32 to vector<8x8x32xf32>
    %39 = arith.cmpf oge, %37, %38 : vector<8x8x32xf32>
    %cst_22 = arith.constant 2.000000e-01 : f32
    %40 = vector.broadcast %cst_22 : f32 to vector<8x8x32xf32>
    %41 = arith.mulf %40, %37 : vector<8x8x32xf32>
    %42 = arith.select %39, %37, %41 : vector<8x8x32xi1>, vector<8x8x32xf32>
    %43 = vector.shape_cast %16 : vector<1x32xf32> to vector<1x1x32xf32>
    %44 = vector.broadcast %43 : vector<1x1x32xf32> to vector<8x8x32xf32>
    %45 = arith.mulf %42, %44 : vector<8x8x32xf32>
    %cst_23 = arith.constant dense<0.000000e+00> : vector<8x8xf32>
    %46 = vector.multi_reduction <add>, %45, %cst_23 [2] : vector<8x8x32xf32> to vector<8x8xf32>
    %cst_24 = arith.constant -1.000000e+30 : f32
    %47 = vector.broadcast %cst_24 : f32 to vector<8x8xf32>
    %48 = arith.select %9, %46, %47 : vector<8x8xi1>, vector<8x8xf32>
    %cst_25 = arith.constant dense<0xFF800000> : vector<8xf32>
    %49 = vector.multi_reduction <maximumf>, %48, %cst_25 [1] : vector<8x8xf32> to vector<8xf32>
    %50 = vector.shape_cast %49 : vector<8xf32> to vector<8x1xf32>
    %51 = vector.broadcast %50 : vector<8x1xf32> to vector<8x8xf32>
    %52 = arith.subf %48, %51 : vector<8x8xf32>
    %53 = math.exp %52 : vector<8x8xf32>
    %cst_26 = arith.constant 0.000000e+00 : f32
    %54 = vector.broadcast %cst_26 : f32 to vector<8x8xf32>
    %55 = arith.select %9, %53, %54 : vector<8x8xi1>, vector<8x8xf32>
    %cst_27 = arith.constant dense<0.000000e+00> : vector<8xf32>
    %56 = vector.multi_reduction <add>, %55, %cst_27 [1] : vector<8x8xf32> to vector<8xf32>
    %57 = vector.shape_cast %56 : vector<8xf32> to vector<8x1xf32>
    %cst_28 = arith.constant 1.000000e-30 : f32
    %58 = vector.broadcast %cst_28 : f32 to vector<8x1xf32>
    %59 = arith.maximumf %57, %58 : vector<8x1xf32>
    %60 = tpu.reciprocal %59 {approx = true} : vector<8x1xf32> -> vector<8x1xf32>
    %61 = vector.broadcast %60 : vector<8x1xf32> to vector<8x8xf32>
    %62 = arith.mulf %55, %61 : vector<8x8xf32>
    %63 = arith.truncf %62 : vector<8x8xf32> to vector<8x8xbf16>
    %64 = arith.truncf %22 : vector<8x32xf32> to vector<8x32xbf16>
    %cst_29 = arith.constant dense<0.000000e+00> : vector<8x32xf32>
    %65 = tpu.matmul %63, %64, %cst_29 {dimension_numbers = #tpu.dot_dimension_numbers<[1], [0], [0], [1], [0, 0, 1, 1], [], []>} : vector<8x8xbf16>, vector<8x32xbf16>, vector<8x32xf32> -> vector<8x32xf32>
    %66 = vector.broadcast %17 : vector<1x32xf32> to vector<8x32xf32>
    %67 = arith.addf %65, %66 : vector<8x32xf32>
    %cst_30 = arith.constant 0.000000e+00 : f32
    %68 = vector.broadcast %cst_30 : f32 to vector<8x32xf32>
    %69 = arith.maximumf %67, %68 : vector<8x32xf32>
    %c56 = arith.constant 56 : index
    %c0_31 = arith.constant 0 : index
    %70 = vector.load %arg2[%c56, %c0_31] : memref<408x128xf32, #tpu.memory_space<vmem>>, vector<32x32xf32>
    %c88 = arith.constant 88 : index
    %c0_32 = arith.constant 0 : index
    %71 = vector.load %arg2[%c88, %c0_32] : memref<408x128xf32, #tpu.memory_space<vmem>>, vector<1x32xf32>
    %c96 = arith.constant 96 : index
    %c0_33 = arith.constant 0 : index
    %72 = vector.load %arg2[%c96, %c0_33] : memref<408x128xf32, #tpu.memory_space<vmem>>, vector<32x32xf32>
    %c128 = arith.constant 128 : index
    %c0_34 = arith.constant 0 : index
    %73 = vector.load %arg2[%c128, %c0_34] : memref<408x128xf32, #tpu.memory_space<vmem>>, vector<1x32xf32>
    %c136 = arith.constant 136 : index
    %c0_35 = arith.constant 0 : index
    %74 = vector.load %arg2[%c136, %c0_35] : memref<408x128xf32, #tpu.memory_space<vmem>>, vector<1x32xf32>
    %c144 = arith.constant 144 : index
    %c0_36 = arith.constant 0 : index
    %75 = vector.load %arg2[%c144, %c0_36] : memref<408x128xf32, #tpu.memory_space<vmem>>, vector<1x32xf32>
    %c152 = arith.constant 152 : index
    %c0_37 = arith.constant 0 : index
    %76 = vector.load %arg2[%c152, %c0_37] : memref<408x128xf32, #tpu.memory_space<vmem>>, vector<1x32xf32>
    %77 = arith.truncf %69 : vector<8x32xf32> to vector<8x32xbf16>
    %78 = arith.truncf %70 : vector<32x32xf32> to vector<32x32xbf16>
    %cst_38 = arith.constant dense<0.000000e+00> : vector<8x32xf32>
    %79 = tpu.matmul %77, %78, %cst_38 {dimension_numbers = #tpu.dot_dimension_numbers<[1], [0], [0], [1], [0, 0, 1, 1], [], []>} : vector<8x32xbf16>, vector<32x32xbf16>, vector<8x32xf32> -> vector<8x32xf32>
    %80 = vector.broadcast %71 : vector<1x32xf32> to vector<8x32xf32>
    %81 = arith.addf %79, %80 : vector<8x32xf32>
    %82 = arith.truncf %69 : vector<8x32xf32> to vector<8x32xbf16>
    %83 = arith.truncf %72 : vector<32x32xf32> to vector<32x32xbf16>
    %cst_39 = arith.constant dense<0.000000e+00> : vector<8x32xf32>
    %84 = tpu.matmul %82, %83, %cst_39 {dimension_numbers = #tpu.dot_dimension_numbers<[1], [0], [0], [1], [0, 0, 1, 1], [], []>} : vector<8x32xbf16>, vector<32x32xbf16>, vector<8x32xf32> -> vector<8x32xf32>
    %85 = vector.broadcast %73 : vector<1x32xf32> to vector<8x32xf32>
    %86 = arith.addf %84, %85 : vector<8x32xf32>
    %87 = vector.shape_cast %74 : vector<1x32xf32> to vector<1x1x32xf32>
    %88 = vector.broadcast %10 : vector<8x8x1xf32> to vector<8x8x32xf32>
    %89 = vector.broadcast %87 : vector<1x1x32xf32> to vector<8x8x32xf32>
    %90 = arith.mulf %88, %89 : vector<8x8x32xf32>
    %91 = vector.shape_cast %81 : vector<8x32xf32> to vector<1x8x32xf32>
    %92 = vector.shape_cast %86 : vector<8x32xf32> to vector<8x1x32xf32>
    %93 = vector.broadcast %91 : vector<1x8x32xf32> to vector<8x8x32xf32>
    %94 = vector.broadcast %92 : vector<8x1x32xf32> to vector<8x8x32xf32>
    %95 = arith.addf %93, %94 : vector<8x8x32xf32>
    %96 = arith.addf %95, %90 : vector<8x8x32xf32>
    %cst_40 = arith.constant 0.000000e+00 : f32
    %97 = vector.broadcast %cst_40 : f32 to vector<8x8x32xf32>
    %98 = arith.cmpf oge, %96, %97 : vector<8x8x32xf32>
    %cst_41 = arith.constant 2.000000e-01 : f32
    %99 = vector.broadcast %cst_41 : f32 to vector<8x8x32xf32>
    %100 = arith.mulf %99, %96 : vector<8x8x32xf32>
    %101 = arith.select %98, %96, %100 : vector<8x8x32xi1>, vector<8x8x32xf32>
    %102 = vector.shape_cast %75 : vector<1x32xf32> to vector<1x1x32xf32>
    %103 = vector.broadcast %102 : vector<1x1x32xf32> to vector<8x8x32xf32>
    %104 = arith.mulf %101, %103 : vector<8x8x32xf32>
    %cst_42 = arith.constant dense<0.000000e+00> : vector<8x8xf32>
    %105 = vector.multi_reduction <add>, %104, %cst_42 [2] : vector<8x8x32xf32> to vector<8x8xf32>
    %cst_43 = arith.constant -1.000000e+30 : f32
    %106 = vector.broadcast %cst_43 : f32 to vector<8x8xf32>
    %107 = arith.select %9, %105, %106 : vector<8x8xi1>, vector<8x8xf32>
    %cst_44 = arith.constant dense<0xFF800000> : vector<8xf32>
    %108 = vector.multi_reduction <maximumf>, %107, %cst_44 [1] : vector<8x8xf32> to vector<8xf32>
    %109 = vector.shape_cast %108 : vector<8xf32> to vector<8x1xf32>
    %110 = vector.broadcast %109 : vector<8x1xf32> to vector<8x8xf32>
    %111 = arith.subf %107, %110 : vector<8x8xf32>
    %112 = math.exp %111 : vector<8x8xf32>
    %cst_45 = arith.constant 0.000000e+00 : f32
    %113 = vector.broadcast %cst_45 : f32 to vector<8x8xf32>
    %114 = arith.select %9, %112, %113 : vector<8x8xi1>, vector<8x8xf32>
    %cst_46 = arith.constant dense<0.000000e+00> : vector<8xf32>
    %115 = vector.multi_reduction <add>, %114, %cst_46 [1] : vector<8x8xf32> to vector<8xf32>
    %116 = vector.shape_cast %115 : vector<8xf32> to vector<8x1xf32>
    %cst_47 = arith.constant 1.000000e-30 : f32
    %117 = vector.broadcast %cst_47 : f32 to vector<8x1xf32>
    %118 = arith.maximumf %116, %117 : vector<8x1xf32>
    %119 = tpu.reciprocal %118 {approx = true} : vector<8x1xf32> -> vector<8x1xf32>
    %120 = vector.broadcast %119 : vector<8x1xf32> to vector<8x8xf32>
    %121 = arith.mulf %114, %120 : vector<8x8xf32>
    %122 = arith.truncf %121 : vector<8x8xf32> to vector<8x8xbf16>
    %123 = arith.truncf %81 : vector<8x32xf32> to vector<8x32xbf16>
    %cst_48 = arith.constant dense<0.000000e+00> : vector<8x32xf32>
    %124 = tpu.matmul %122, %123, %cst_48 {dimension_numbers = #tpu.dot_dimension_numbers<[1], [0], [0], [1], [0, 0, 1, 1], [], []>} : vector<8x8xbf16>, vector<8x32xbf16>, vector<8x32xf32> -> vector<8x32xf32>
    %125 = vector.broadcast %76 : vector<1x32xf32> to vector<8x32xf32>
    %126 = arith.addf %124, %125 : vector<8x32xf32>
    %cst_49 = arith.constant 0.000000e+00 : f32
    %127 = vector.broadcast %cst_49 : f32 to vector<8x32xf32>
    %128 = arith.maximumf %126, %127 : vector<8x32xf32>
    %c160 = arith.constant 160 : index
    %c0_50 = arith.constant 0 : index
    %129 = vector.load %arg2[%c160, %c0_50] : memref<408x128xf32, #tpu.memory_space<vmem>>, vector<32x32xf32>
    %c192 = arith.constant 192 : index
    %c0_51 = arith.constant 0 : index
    %130 = vector.load %arg2[%c192, %c0_51] : memref<408x128xf32, #tpu.memory_space<vmem>>, vector<1x32xf32>
    %c200 = arith.constant 200 : index
    %c0_52 = arith.constant 0 : index
    %131 = vector.load %arg2[%c200, %c0_52] : memref<408x128xf32, #tpu.memory_space<vmem>>, vector<32x32xf32>
    %c232 = arith.constant 232 : index
    %c0_53 = arith.constant 0 : index
    %132 = vector.load %arg2[%c232, %c0_53] : memref<408x128xf32, #tpu.memory_space<vmem>>, vector<1x32xf32>
    %c240 = arith.constant 240 : index
    %c0_54 = arith.constant 0 : index
    %133 = vector.load %arg2[%c240, %c0_54] : memref<408x128xf32, #tpu.memory_space<vmem>>, vector<1x32xf32>
    %c248 = arith.constant 248 : index
    %c0_55 = arith.constant 0 : index
    %134 = vector.load %arg2[%c248, %c0_55] : memref<408x128xf32, #tpu.memory_space<vmem>>, vector<1x32xf32>
    %c256 = arith.constant 256 : index
    %c0_56 = arith.constant 0 : index
    %135 = vector.load %arg2[%c256, %c0_56] : memref<408x128xf32, #tpu.memory_space<vmem>>, vector<1x32xf32>
    %136 = arith.truncf %128 : vector<8x32xf32> to vector<8x32xbf16>
    %137 = arith.truncf %129 : vector<32x32xf32> to vector<32x32xbf16>
    %cst_57 = arith.constant dense<0.000000e+00> : vector<8x32xf32>
    %138 = tpu.matmul %136, %137, %cst_57 {dimension_numbers = #tpu.dot_dimension_numbers<[1], [0], [0], [1], [0, 0, 1, 1], [], []>} : vector<8x32xbf16>, vector<32x32xbf16>, vector<8x32xf32> -> vector<8x32xf32>
    %139 = vector.broadcast %130 : vector<1x32xf32> to vector<8x32xf32>
    %140 = arith.addf %138, %139 : vector<8x32xf32>
    %141 = arith.truncf %128 : vector<8x32xf32> to vector<8x32xbf16>
    %142 = arith.truncf %131 : vector<32x32xf32> to vector<32x32xbf16>
    %cst_58 = arith.constant dense<0.000000e+00> : vector<8x32xf32>
    %143 = tpu.matmul %141, %142, %cst_58 {dimension_numbers = #tpu.dot_dimension_numbers<[1], [0], [0], [1], [0, 0, 1, 1], [], []>} : vector<8x32xbf16>, vector<32x32xbf16>, vector<8x32xf32> -> vector<8x32xf32>
    %144 = vector.broadcast %132 : vector<1x32xf32> to vector<8x32xf32>
    %145 = arith.addf %143, %144 : vector<8x32xf32>
    %146 = vector.shape_cast %133 : vector<1x32xf32> to vector<1x1x32xf32>
    %147 = vector.broadcast %10 : vector<8x8x1xf32> to vector<8x8x32xf32>
    %148 = vector.broadcast %146 : vector<1x1x32xf32> to vector<8x8x32xf32>
    %149 = arith.mulf %147, %148 : vector<8x8x32xf32>
    %150 = vector.shape_cast %140 : vector<8x32xf32> to vector<1x8x32xf32>
    %151 = vector.shape_cast %145 : vector<8x32xf32> to vector<8x1x32xf32>
    %152 = vector.broadcast %150 : vector<1x8x32xf32> to vector<8x8x32xf32>
    %153 = vector.broadcast %151 : vector<8x1x32xf32> to vector<8x8x32xf32>
    %154 = arith.addf %152, %153 : vector<8x8x32xf32>
    %155 = arith.addf %154, %149 : vector<8x8x32xf32>
    %cst_59 = arith.constant 0.000000e+00 : f32
    %156 = vector.broadcast %cst_59 : f32 to vector<8x8x32xf32>
    %157 = arith.cmpf oge, %155, %156 : vector<8x8x32xf32>
    %cst_60 = arith.constant 2.000000e-01 : f32
    %158 = vector.broadcast %cst_60 : f32 to vector<8x8x32xf32>
    %159 = arith.mulf %158, %155 : vector<8x8x32xf32>
    %160 = arith.select %157, %155, %159 : vector<8x8x32xi1>, vector<8x8x32xf32>
    %161 = vector.shape_cast %134 : vector<1x32xf32> to vector<1x1x32xf32>
    %162 = vector.broadcast %161 : vector<1x1x32xf32> to vector<8x8x32xf32>
    %163 = arith.mulf %160, %162 : vector<8x8x32xf32>
    %cst_61 = arith.constant dense<0.000000e+00> : vector<8x8xf32>
    %164 = vector.multi_reduction <add>, %163, %cst_61 [2] : vector<8x8x32xf32> to vector<8x8xf32>
    %cst_62 = arith.constant -1.000000e+30 : f32
    %165 = vector.broadcast %cst_62 : f32 to vector<8x8xf32>
    %166 = arith.select %9, %164, %165 : vector<8x8xi1>, vector<8x8xf32>
    %cst_63 = arith.constant dense<0xFF800000> : vector<8xf32>
    %167 = vector.multi_reduction <maximumf>, %166, %cst_63 [1] : vector<8x8xf32> to vector<8xf32>
    %168 = vector.shape_cast %167 : vector<8xf32> to vector<8x1xf32>
    %169 = vector.broadcast %168 : vector<8x1xf32> to vector<8x8xf32>
    %170 = arith.subf %166, %169 : vector<8x8xf32>
    %171 = math.exp %170 : vector<8x8xf32>
    %cst_64 = arith.constant 0.000000e+00 : f32
    %172 = vector.broadcast %cst_64 : f32 to vector<8x8xf32>
    %173 = arith.select %9, %171, %172 : vector<8x8xi1>, vector<8x8xf32>
    %cst_65 = arith.constant dense<0.000000e+00> : vector<8xf32>
    %174 = vector.multi_reduction <add>, %173, %cst_65 [1] : vector<8x8xf32> to vector<8xf32>
    %175 = vector.shape_cast %174 : vector<8xf32> to vector<8x1xf32>
    %cst_66 = arith.constant 1.000000e-30 : f32
    %176 = vector.broadcast %cst_66 : f32 to vector<8x1xf32>
    %177 = arith.maximumf %175, %176 : vector<8x1xf32>
    %178 = tpu.reciprocal %177 {approx = true} : vector<8x1xf32> -> vector<8x1xf32>
    %179 = vector.broadcast %178 : vector<8x1xf32> to vector<8x8xf32>
    %180 = arith.mulf %173, %179 : vector<8x8xf32>
    %181 = arith.truncf %180 : vector<8x8xf32> to vector<8x8xbf16>
    %182 = arith.truncf %140 : vector<8x32xf32> to vector<8x32xbf16>
    %cst_67 = arith.constant dense<0.000000e+00> : vector<8x32xf32>
    %183 = tpu.matmul %181, %182, %cst_67 {dimension_numbers = #tpu.dot_dimension_numbers<[1], [0], [0], [1], [0, 0, 1, 1], [], []>} : vector<8x8xbf16>, vector<8x32xbf16>, vector<8x32xf32> -> vector<8x32xf32>
    %184 = vector.broadcast %135 : vector<1x32xf32> to vector<8x32xf32>
    %185 = arith.addf %183, %184 : vector<8x32xf32>
    %cst_68 = arith.constant 0.000000e+00 : f32
    %186 = vector.broadcast %cst_68 : f32 to vector<8x32xf32>
    %187 = arith.maximumf %185, %186 : vector<8x32xf32>
    %188 = arith.truncf %7 : vector<2x8xf32> to vector<2x8xbf16>
    %189 = arith.truncf %187 : vector<8x32xf32> to vector<8x32xbf16>
    %cst_69 = arith.constant dense<0.000000e+00> : vector<2x32xf32>
    %190 = tpu.matmul %188, %189, %cst_69 {dimension_numbers = #tpu.dot_dimension_numbers<[1], [0], [0], [1], [0, 0, 1, 1], [], []>} : vector<2x8xbf16>, vector<8x32xbf16>, vector<2x32xf32> -> vector<2x32xf32>
    %c264 = arith.constant 264 : index
    %c0_70 = arith.constant 0 : index
    %191 = vector.load %arg2[%c264, %c0_70] : memref<408x128xf32, #tpu.memory_space<vmem>>, vector<32x32xf32>
    %192 = arith.truncf %190 : vector<2x32xf32> to vector<2x32xbf16>
    %193 = arith.truncf %191 : vector<32x32xf32> to vector<32x32xbf16>
    %cst_71 = arith.constant dense<0.000000e+00> : vector<2x32xf32>
    %194 = tpu.matmul %192, %193, %cst_71 {dimension_numbers = #tpu.dot_dimension_numbers<[1], [0], [0], [1], [0, 0, 1, 1], [], []>} : vector<2x32xbf16>, vector<32x32xbf16>, vector<2x32xf32> -> vector<2x32xf32>
    %c296 = arith.constant 296 : index
    %c0_72 = arith.constant 0 : index
    %195 = vector.load %arg2[%c296, %c0_72] : memref<408x128xf32, #tpu.memory_space<vmem>>, vector<1x32xf32>
    %196 = vector.broadcast %195 : vector<1x32xf32> to vector<2x32xf32>
    %197 = arith.addf %194, %196 : vector<2x32xf32>
    %cst_73 = arith.constant 0.000000e+00 : f32
    %198 = vector.broadcast %cst_73 : f32 to vector<2x32xf32>
    %199 = arith.maximumf %197, %198 : vector<2x32xf32>
    %c304 = arith.constant 304 : index
    %c0_74 = arith.constant 0 : index
    %200 = vector.load %arg2[%c304, %c0_74] : memref<408x128xf32, #tpu.memory_space<vmem>>, vector<32x32xf32>
    %201 = arith.truncf %199 : vector<2x32xf32> to vector<2x32xbf16>
    %202 = arith.truncf %200 : vector<32x32xf32> to vector<32x32xbf16>
    %cst_75 = arith.constant dense<0.000000e+00> : vector<2x32xf32>
    %203 = tpu.matmul %201, %202, %cst_75 {dimension_numbers = #tpu.dot_dimension_numbers<[1], [0], [0], [1], [0, 0, 1, 1], [], []>} : vector<2x32xbf16>, vector<32x32xbf16>, vector<2x32xf32> -> vector<2x32xf32>
    %c336 = arith.constant 336 : index
    %c0_76 = arith.constant 0 : index
    %204 = vector.load %arg2[%c336, %c0_76] : memref<408x128xf32, #tpu.memory_space<vmem>>, vector<1x32xf32>
    %205 = vector.broadcast %204 : vector<1x32xf32> to vector<2x32xf32>
    %206 = arith.addf %203, %205 : vector<2x32xf32>
    %cst_77 = arith.constant 0.000000e+00 : f32
    %207 = vector.broadcast %cst_77 : f32 to vector<2x32xf32>
    %208 = arith.maximumf %206, %207 : vector<2x32xf32>
    %c344 = arith.constant 344 : index
    %c0_78 = arith.constant 0 : index
    %209 = vector.load %arg2[%c344, %c0_78] : memref<408x128xf32, #tpu.memory_space<vmem>>, vector<32x16xf32>
    %210 = arith.truncf %208 : vector<2x32xf32> to vector<2x32xbf16>
    %211 = arith.truncf %209 : vector<32x16xf32> to vector<32x16xbf16>
    %cst_79 = arith.constant dense<0.000000e+00> : vector<2x16xf32>
    %212 = tpu.matmul %210, %211, %cst_79 {dimension_numbers = #tpu.dot_dimension_numbers<[1], [0], [0], [1], [0, 0, 1, 1], [], []>} : vector<2x32xbf16>, vector<32x16xbf16>, vector<2x16xf32> -> vector<2x16xf32>
    %c376 = arith.constant 376 : index
    %c0_80 = arith.constant 0 : index
    %213 = vector.load %arg2[%c376, %c0_80] : memref<408x128xf32, #tpu.memory_space<vmem>>, vector<1x16xf32>
    %214 = vector.broadcast %213 : vector<1x16xf32> to vector<2x16xf32>
    %215 = arith.addf %212, %214 : vector<2x16xf32>
    %cst_81 = arith.constant 0.000000e+00 : f32
    %216 = vector.broadcast %cst_81 : f32 to vector<2x16xf32>
    %217 = arith.maximumf %215, %216 : vector<2x16xf32>
    %c384 = arith.constant 384 : index
    %c0_82 = arith.constant 0 : index
    %218 = vector.load %arg2[%c384, %c0_82] : memref<408x128xf32, #tpu.memory_space<vmem>>, vector<16x128xf32>
    %219 = arith.truncf %217 : vector<2x16xf32> to vector<2x16xbf16>
    %220 = arith.truncf %218 : vector<16x128xf32> to vector<16x128xbf16>
    %cst_83 = arith.constant dense<0.000000e+00> : vector<2x128xf32>
    %221 = tpu.matmul %219, %220, %cst_83 {dimension_numbers = #tpu.dot_dimension_numbers<[1], [0], [0], [1], [0, 0, 1, 1], [], []>} : vector<2x16xbf16>, vector<16x128xbf16>, vector<2x128xf32> -> vector<2x128xf32>
    %c400 = arith.constant 400 : index
    %c0_84 = arith.constant 0 : index
    %222 = vector.load %arg2[%c400, %c0_84] : memref<408x128xf32, #tpu.memory_space<vmem>>, vector<1x128xf32>
    %223 = vector.broadcast %222 : vector<1x128xf32> to vector<2x128xf32>
    %224 = arith.addf %221, %223 : vector<2x128xf32>
    %c0_85 = arith.constant 0 : index
    %c0_86 = arith.constant 0 : index
    %c0_87 = arith.constant 0 : index
    %225 = vector.load %arg3[%c0_85, %c0_86, %c0_87] : memref<1x2x128xf32, #tpu.memory_space<vmem>>, vector<1x2x128xf32>
    %226 = vector.shape_cast %225 : vector<1x2x128xf32> to vector<2x128xf32>
    %227 = vector.shape_cast %224 : vector<2x128xf32> to vector<1x2x128xf32>
    tpu.vector_store %arg3[%c0_85, %c0_86, %c0_87], %227 {strides = array<i32>} : memref<1x2x128xf32, #tpu.memory_space<vmem>>, vector<1x2x128xf32>,
    return
  }
  func.func @transform_0(%arg0: i32) -> (i32, i32, i32) {
    %c0_i32 = arith.constant 0 : i32
    %c0_i32_0 = arith.constant 0 : i32
    %c0_i32_1 = arith.constant 0 : i32
    return %arg0, %c0_i32, %c0_i32_0 : i32, i32, i32
  }
  func.func @transform_1(%arg0: i32) -> (i32, i32) {
    %c0_i32 = arith.constant 0 : i32
    %c0_i32_0 = arith.constant 0 : i32
    %c0_i32_1 = arith.constant 0 : i32
    return %c0_i32, %c0_i32_0 : i32, i32
  }
  func.func @transform_2(%arg0: i32) -> (i32, i32, i32) {
    %c0_i32 = arith.constant 0 : i32
    %c0_i32_0 = arith.constant 0 : i32
    %c0_i32_1 = arith.constant 0 : i32
    return %arg0, %c0_i32, %c0_i32_0 : i32, i32, i32
  }
}

</mosaic_0001>

<llo_original>
// kernel: tpu_custom_call.1
$region0: #{tpu_custom_call.1}
  #allocation0 [shape = 'u32[]', space=smem, size = 0x4, offset = 0x4, fixed_abs, tag = 'smem constant byte address 0x4 - core index']
  #allocation1 [shape = 'u32[144,128]{1,0:T(1,128)}', space=vmem, size = 0x12000, scoped, tag = 'internal scratch']
  %s0 = inlined_call_operand.hbm [shape: f32[8,32,128], index: 0, kind: input, shape index: {}]
  %s1 = inlined_call_operand.hbm [shape: f32[408,128], index: 1, kind: input, shape index: {}]
  %s2 = inlined_call_operand.hbm [shape: f32[8,2,128], index: 2, kind: output, shape index: {}]
  %s3 = sld [smem:[#allocation0]]
  $region49: #{tpu_custom_call.1} parent=0
    _
  %s5 = ssub.s32 1, %s3
  %s6 = scalar_select 0, %s5, %s3
  $region1: #{tpu_custom_call.1} parent=0
    #allocation2 [shape = 'u8[32768]{0}', space=vmem, size = 0x8000, scoped, tag = 'input window, operand 0']
    #allocation3 [shape = 's32[2]{0}', space=sflag, size = 0x8, scoped, tag = 'scoped memory for tpu_custom_call.1']
    #allocation4 [shape = 's32[2]{0}', space=sflag, size = 0x8, scoped, tag = 'scoped memory for tpu_custom_call.1']
    #allocation5 [shape = 'u8[208896]{0}', space=vmem, size = 0x33000, scoped, tag = 'input window, operand 1, single buffered']
    #allocation6 [shape = 's32[1]{0}', space=sflag, size = 0x4, scoped, tag = 'scoped memory for tpu_custom_call.1']
    #allocation7 [shape = 'u8[2048]{0}', space=vmem, size = 0x800, scoped, tag = 'output window, operand 0']
    %7 = vsyncpa [#allocation3], 0
    %s8 = scalar_lea.sflag [#allocation3], 1
    %9 = vsyncpa %s8, 0
    %10 = vsyncpa [#allocation6], 0
    %11 = vsyncpa [#allocation4], 0
    %s12 = scalar_lea.sflag [#allocation4], 1
    %13 = vsyncpa %s12, 0
    loop: start=0, step=1, limit=10
    $region2: #{tpu_custom_call.1} parent=1 // loop_pre_header
      _
    $region3: #{tpu_custom_call.1} parent=1 // loop_header
      %s15 = sphi 0, %s19
      %p16 = scmp.ge.s32.totalorder %s15, 10
      %s25 = sphi 0, %s27
      %s28 = sphi 0, %s25
      %s29 = sphi 0, %s28
      %s45 = sphi 0, %s29
      %s49 = sphi 0, %s49
      %s51 = sphi 0, %s49
      %s52 = sphi 0, %s51
      %s66 = sphi 0, %s52
      %s72 = sphi 0, %s74
      %s75 = sphi 0, %s72
      %s76 = sphi 0, %s75
      %s92 = sphi 0, %s76
    $region4: #{tpu_custom_call.1} parent=1 // loop_header_branch
      %18 = sbr.rel (%p16) target = $region8
    $region5: #{tpu_custom_call.1} parent=1 // loop_body
      %s20 = ssub.s32 %s15, 1
      %s21 = ssub.s32 %s15, 2
      %s22 = sadd.s32 %s15, 1
      %s23 = ssub.s32 %s15, %s22
      %p24 = scmp.eq.s32.totalorder %s23, 0
      %s26 = sadd.s32 %s25, 1
      %s27 = scalar_select %p24, %s25, %s26
      %p30 = pneg %p24
      %p31 = scmp.eq.s32.totalorder %s15, 7
      %p32 = por %p30, %p31
      %p33 = scmp.ne.s32.totalorder %s25, %s28
      %p34 = scmp.eq.s32.totalorder %s15, 0
      %p35 = por %p33, %p34
      %p36 = scmp.ne.s32.totalorder %s25, %s28
      %p37 = scmp.eq.s32.totalorder %s20, 7
      %p38 = por %p36, %p37
      %p39 = scmp.ne.s32.totalorder %s28, %s29
      %p40 = scmp.eq.s32.totalorder %s20, 0
      %p41 = por %p39, %p40
      %p42 = scmp.ne.s32.totalorder %s28, %s29
      %p43 = scmp.eq.s32.totalorder %s21, 7
      %p44 = por %p42, %p43
      %p46 = scmp.ne.s32.totalorder %s29, %s45
      %p47 = scmp.eq.s32.totalorder %s21, 0
      %p48 = por %p46, %p47
      %s50 = sadd.s32 %s49, 1
      %p53 = scmp.eq.s32.totalorder %s15, 7
      %p54 = scmp.ne.s32.totalorder %s49, %s51
      %p55 = scmp.eq.s32.totalorder %s15, 0
      %p56 = por %p54, %p55
      %p57 = scmp.ne.s32.totalorder %s49, %s51
      %p58 = scmp.eq.s32.totalorder %s20, 7
      %p59 = por %p57, %p58
      %p60 = scmp.ne.s32.totalorder %s51, %s52
      %p61 = scmp.eq.s32.totalorder %s20, 0
      %p62 = por %p60, %p61
      %p63 = scmp.ne.s32.totalorder %s51, %s52
      %p64 = scmp.eq.s32.totalorder %s21, 7
      %p65 = por %p63, %p64
      %p67 = scmp.ne.s32.totalorder %s52, %s66
      %p68 = scmp.eq.s32.totalorder %s21, 0
      %p69 = por %p67, %p68
      %s70 = ssub.s32 %s15, %s22
      %p71 = scmp.eq.s32.totalorder %s70, 0
      %s73 = sadd.s32 %s72, 1
      %s74 = scalar_select %p71, %s72, %s73
      %p77 = pneg %p71
      %p78 = scmp.eq.s32.totalorder %s15, 7
      %p79 = por %p77, %p78
      %p80 = scmp.ne.s32.totalorder %s72, %s75
      %p81 = scmp.eq.s32.totalorder %s15, 0
      %p82 = por %p80, %p81
      %p83 = scmp.ne.s32.totalorder %s72, %s75
      %p84 = scmp.eq.s32.totalorder %s20, 7
      %p85 = por %p83, %p84
      %p86 = scmp.ne.s32.totalorder %s75, %s76
      %p87 = scmp.eq.s32.totalorder %s20, 0
      %p88 = por %p86, %p87
      %p89 = scmp.ne.s32.totalorder %s75, %s76
      %p90 = scmp.eq.s32.totalorder %s21, 7
      %p91 = por %p89, %p90
      %p93 = scmp.ne.s32.totalorder %s76, %s92
      %p94 = scmp.eq.s32.totalorder %s21, 0
      %p95 = por %p93, %p94
      %p96 = scmp.le.s32.totalorder 1, %s15
      %p97 = scmp.lt.s32.totalorder %s15, 9
      %p98 = pnand %p96, %p97
      %p99 = pneg %p98
      // Predicated region
      $region9: #{tpu_custom_call.1} parent=5 // pred_check
        _
      $region10: #{tpu_custom_call.1} parent=5 // pred_check_branch
        %101 = sbr.rel (%p98) target = $region12
      $region11: #{tpu_custom_call.1} parent=5 // pred_region
        %s102 = ssub.s32 %s15, 1
        // Predicated region
        $region13: #{tpu_custom_call.1} parent=11 // pred_check
          %p103 = pneg %p62
        $region14: #{tpu_custom_call.1} parent=11 // pred_check_branch
          %105 = sbr.rel (%p103) target = $region16
        $region15: #{tpu_custom_call.1} parent=11 // pred_region
          %s107 = ssub.s32 6528, 6528
          %108 = vsyncadd [#allocation6], %s107
          %s109 = sshll.u32 [#allocation5], 4
          %s110 = int_to_ptr.vmem [resolvable:$true] %s109
          %115 = dma.hbm_to_vmem [thread:$0]  %s1, 6528, %s110, [#allocation6], 128, 128, 8
        $region16: #{tpu_custom_call.1} parent=11 // pred_fallthru
          _
      $region12: #{tpu_custom_call.1} parent=5 // pred_fallthru
        _
      %p116 = scmp.lt.s32.totalorder %s15, 8
      // Predicated region
      $region17: #{tpu_custom_call.1} parent=5 // pred_check
        %p117 = pneg %p116
      $region18: #{tpu_custom_call.1} parent=5 // pred_check_branch
        %119 = sbr.rel (%p117) target = $region20
      $region19: #{tpu_custom_call.1} parent=5 // pred_region
        // Predicated region
        $region21: #{tpu_custom_call.1} parent=19 // pred_check
          %p120 = pneg %p35
        $region22: #{tpu_custom_call.1} parent=19 // pred_check_branch
          %122 = sbr.rel (%p120) target = $region24
        $region23: #{tpu_custom_call.1} parent=19 // pred_region
          %s123 = sand.u32 %s25, 1
          %s124 = scalar_lea.sflag [#allocation3], %s123
          %s125 = sand.u32 %s25, 1
          %s126 = smul.addr %s125, 32
          %s127 = scalar_lea.vmem [#allocation2], %s126
          %s129 = ssub.s32 512, 512
          %130 = vsyncadd %s124, %s129
          %s131 = smul.addr %s15, 4
          %s132 = smul.addr %s131, 128
          %s133 = scalar_lea.hbm %s0, %s132
          %s134 = sshll.u32 %s127, 4
          %s135 = int_to_ptr.vmem [resolvable:$true] %s134
          %140 = dma.hbm_to_vmem [thread:$0]  %s133, 512, %s135, %s124, 128, 128, 8
        $region24: #{tpu_custom_call.1} parent=19 // pred_fallthru
          _
      $region20: #{tpu_custom_call.1} parent=5 // pred_fallthru
        _
      %p141 = scmp.le.s32.totalorder 1, %s15
      %p142 = scmp.lt.s32.totalorder %s15, 9
      %p143 = pnand %p141, %p142
      %p144 = pneg %p143
      // Predicated region
      $region25: #{tpu_custom_call.1} parent=5 // pred_check
        _
      $region26: #{tpu_custom_call.1} parent=5 // pred_check_branch
        %146 = sbr.rel (%p143) target = $region28
      $region27: #{tpu_custom_call.1} parent=5 // pred_region
        %s147 = ssub.s32 %s15, 1
        %s148 = sand.u32 %s28, 1
        %s149 = scalar_lea.sflag [#allocation3], %s148
        %s150 = sand.u32 %s28, 1
        %s151 = smul.addr %s150, 32
        %s152 = scalar_lea.vmem [#allocation2], %s151
        // Predicated region
        $region29: #{tpu_custom_call.1} parent=27 // pred_check
          %p153 = pneg %p41
        $region30: #{tpu_custom_call.1} parent=27 // pred_check_branch
          %155 = sbr.rel (%p153) target = $region32
        $region31: #{tpu_custom_call.1} parent=27 // pred_region
          %156 = dma.done %s149, 512
        $region32: #{tpu_custom_call.1} parent=27 // pred_fallthru
          _
        // Predicated region
        $region33: #{tpu_custom_call.1} parent=27 // pred_check
          %p157 = pneg %p62
        $region34: #{tpu_custom_call.1} parent=27 // pred_check_branch
          %159 = sbr.rel (%p157) target = $region36
        $region35: #{tpu_custom_call.1} parent=27 // pred_region
          %160 = dma.done [#allocation6], 6528
        $region36: #{tpu_custom_call.1} parent=27 // pred_fallthru
          _
        %s161 = sand.u32 %s28, 1
        %s162 = scalar_lea.sflag [#allocation3], %s161
        %s163 = sand.u32 %s28, 1
        %s164 = smul.addr %s163, 32
        %s165 = scalar_lea.vmem [#allocation2], %s164
        %p166 = pneg %p41
        %p167 = pneg %p38
        %p168 = pneg %p62
        %p169 = pneg %p59
        %p170 = pneg %p88
        %p171 = pneg %p85
        %s172 = sand.u32 %s75, 1
        %s173 = scalar_lea.sflag [#allocation4], %s172
        %s174 = sand.u32 %s75, 1
        %s175 = smul.addr %s174, 2
        %s176 = scalar_lea.vmem [#allocation7], %s175
        %v178 = vld [vmem:[%s152] sm:$0xff]
        %v179 = vld [vmem:[%s152 + $0x8] sm:$0xff]
        %v180 = vld [vmem:[%s152 + $0x10] sm:$0xff]
        %v181 = vld [vmem:[%s152 + $0x18] sm:$0x3]
        %vm182 = vcmp.gt.f32.partialorder %v179, 0.0
        %v183 = vlaneseq
        %v184 = vshrl.u32 %v183, 7
        %v185 = vsub.s32 0, %v184
        %v186 = vrot.slane %v180, %v185
        %188 = vbcast.lane.b32.xlu0 %v186, 256
        %v189 = vpop.permute.xlu0 %188
        %v190 = vlaneseq
        %v191 = vshrl.u32 %v190, 7
        %v192 = vsub.s32 1, %v191
        %v193 = vrot.slane %v180, %v192
        %195 = vbcast.lane.b32.xlu0 %v193, 256
        %v196 = vpop.permute.xlu0 %195
        %v197 = vlaneseq
        %v198 = vshrl.u32 %v197, 7
        %v199 = vsub.s32 2, %v198
        %v200 = vrot.slane %v180, %v199
        %202 = vbcast.lane.b32.xlu0 %v200, 256
        %v203 = vpop.permute.xlu0 %202
        %v204 = vlaneseq
        %v205 = vshrl.u32 %v204, 7
        %v206 = vsub.s32 3, %v205
        %v207 = vrot.slane %v180, %v206
        %209 = vbcast.lane.b32.xlu0 %v207, 256
        %v210 = vpop.permute.xlu0 %209
        %v211 = vlaneseq
        %v212 = vshrl.u32 %v211, 7
        %v213 = vsub.s32 4, %v212
        %v214 = vrot.slane %v180, %v213
        %216 = vbcast.lane.b32.xlu0 %v214, 256
        %v217 = vpop.permute.xlu0 %216
        %v218 = vlaneseq
        %v219 = vshrl.u32 %v218, 7
        %v220 = vsub.s32 5, %v219
        %v221 = vrot.slane %v180, %v220
        %223 = vbcast.lane.b32.xlu0 %v221, 256
        %v224 = vpop.permute.xlu0 %223
        %v225 = vlaneseq
        %v226 = vshrl.u32 %v225, 7
        %v227 = vsub.s32 6, %v226
        %v228 = vrot.slane %v180, %v227
        %230 = vbcast.lane.b32.xlu0 %v228, 256
        %v231 = vpop.permute.xlu0 %230
        %v232 = vlaneseq
        %v233 = vshrl.u32 %v232, 7
        %v234 = vsub.s32 7, %v233
        %v235 = vrot.slane %v180, %v234
        %237 = vbcast.lane.b32.xlu0 %v235, 256
        %v238 = vpop.permute.xlu0 %237
        %v239 = vld [vmem:[#allocation5] sm:$0xf]
        %v240 = vld [vmem:[#allocation5 + $0x8] sm:$0x1]
        %v241 = vld [vmem:[#allocation5 + $0x10] sm:$0xf]
        %v242 = vld [vmem:[#allocation5 + $0x18] sm:$0x1]
        %v243 = vld [vmem:[#allocation5 + $0x20] sm:$0x1]
        %v244 = vld [vmem:[#allocation5 + $0x28] sm:$0x1]
        %v245 = vld [vmem:[#allocation5 + $0x30] sm:$0x1]
        %v246 = vpack.c.bf16 %v178, %v178
        %v247 = vpack.c.bf16 %v239, %v239
        %v248 = vlaneseq
        %v249 = vshrl.u32 %v248, 7
        %v250 = vsub.s32 0, %v249
        %v251 = vrot.slane %v240, %v250
        %vm252 = vcmask 31744
        %v254 = vsel %vm252, %v246, 0
        %vm256 = vcmask 1041408
        %v258 = vsel %vm256, %v247, 0
        %260 = vmatprep.subr.bf16.mxu0 0
        %261 = vmatpush1.bf16.msra.mxu0 %v258
        %262 = vmatprep.subr.bf16.mxu0 0
        %263 = vmatpush1.bf16.msra.mxu0 0
        %264 = vmatprep.subr.bf16.mxu0 0
        %265 = vmatpush1.bf16.msra.mxu0 0
        %266 = vmatprep.subr.bf16.mxu0 0
        %267 = vmatpush1.bf16.msra.mxu0 0
        %268 = vmatprep.subr.bf16.mxu0 0
        %269 = vmatpush1.bf16.msra.mxu0 0
        %270 = vmatprep.subr.bf16.mxu0 0
        %271 = vmatpush1.bf16.msra.mxu0 0
        %272 = vmatprep.subr.bf16.mxu0 0
        %273 = vmatpush1.bf16.msra.mxu0 0
        %274 = vmatprep.subr.bf16.mxu0 0
        %275 = vmatpush1.bf16.msra.mxu0 0
        %276 = vmatprep.subr.bf16.mxu0 0
        %277 = vmatpush1.bf16.msra.mxu0 0
        %278 = vmatprep.subr.bf16.mxu0 0
        %279 = vmatpush1.bf16.msra.mxu0 0
        %280 = vmatprep.subr.bf16.mxu0 0
        %281 = vmatpush1.bf16.msra.mxu0 0
        %282 = vmatprep.subr.bf16.mxu0 0
        %283 = vmatpush1.bf16.msra.mxu0 0
        %284 = vmatprep.subr.bf16.mxu0 0
        %285 = vmatpush1.bf16.msra.mxu0 0
        %286 = vmatprep.subr.bf16.mxu0 0
        %287 = vmatpush1.bf16.msra.mxu0 0
        %288 = vmatprep.subr.bf16.mxu0 0
        %289 = vmatpush1.bf16.msra.mxu0 0
        %290 = vmatprep.subr.bf16.mxu0 0
        %291 = vmatpush1.bf16.msra.mxu0 0
        %292 = vmatprep.mubr.bf16.mxu0 0
        %293 = vmatmul.mubr.bf16.gmra.mrb[0].mxu0 %v254
        %v294 = vpop.f32.mrb[0].mxu0
        %v295 = vadd.f32 %v251, %v294
        %v296 = vpop.f32.mrb[0].mxu0
        %v297 = vpop.f32.mrb[0].mxu0
        %v298 = vpop.f32.mrb[0].mxu0
        %299 = vdwg.mxu0
        %v300 = vpack.c.bf16 %v241, %v241
        %v301 = vlaneseq
        %v302 = vshrl.u32 %v301, 7
        %v303 = vsub.s32 0, %v302
        %v304 = vrot.slane %v242, %v303
        %v306 = vsel %vm256, %v300, 0
        %308 = vmatprep.subr.bf16.mxu0 0
        %309 = vmatpush1.bf16.msra.mxu0 %v306
        %310 = vmatprep.subr.bf16.mxu0 0
        %311 = vmatpush1.bf16.msra.mxu0 0
        %312 = vmatprep.subr.bf16.mxu0 0
        %313 = vmatpush1.bf16.msra.mxu0 0
        %314 = vmatprep.subr.bf16.mxu0 0
        %315 = vmatpush1.bf16.msra.mxu0 0
        %316 = vmatprep.subr.bf16.mxu0 0
        %317 = vmatpush1.bf16.msra.mxu0 0
        %318 = vmatprep.subr.bf16.mxu0 0
        %319 = vmatpush1.bf16.msra.mxu0 0
        %320 = vmatprep.subr.bf16.mxu0 0
        %321 = vmatpush1.bf16.msra.mxu0 0
        %322 = vmatprep.subr.bf16.mxu0 0
        %323 = vmatpush1.bf16.msra.mxu0 0
        %324 = vmatprep.subr.bf16.mxu0 0
        %325 = vmatpush1.bf16.msra.mxu0 0
        %326 = vmatprep.subr.bf16.mxu0 0
        %327 = vmatpush1.bf16.msra.mxu0 0
        %328 = vmatprep.subr.bf16.mxu0 0
        %329 = vmatpush1.bf16.msra.mxu0 0
        %330 = vmatprep.subr.bf16.mxu0 0
        %331 = vmatpush1.bf16.msra.mxu0 0
        %332 = vmatprep.subr.bf16.mxu0 0
        %333 = vmatpush1.bf16.msra.mxu0 0
        %334 = vmatprep.subr.bf16.mxu0 0
        %335 = vmatpush1.bf16.msra.mxu0 0
        %336 = vmatprep.subr.bf16.mxu0 0
        %337 = vmatpush1.bf16.msra.mxu0 0
        %338 = vmatprep.subr.bf16.mxu0 0
        %339 = vmatpush1.bf16.msra.mxu0 0
        %340 = vmatprep.mubr.bf16.mxu0 0
        %341 = vmatmul.mubr.bf16.gmra.mrb[0].mxu0 %v254
        %v342 = vpop.f32.mrb[0].mxu0
        %v343 = vadd.f32 %v304, %v342
        %v344 = vpop.f32.mrb[0].mxu0
        %v345 = vpop.f32.mrb[0].mxu0
        %v346 = vpop.f32.mrb[0].mxu0
        %347 = vdwg.mxu0
        %v348 = vlaneseq
        %v349 = vshrl.u32 %v348, 7
        %v350 = vsub.s32 0, %v349
        %v351 = vrot.slane %v243, %v350
        %v352 = vmul.f32 %v189, %v351
        %v353 = vmul.f32 %v196, %v351
        %v354 = vmul.f32 %v203, %v351
        %v355 = vmul.f32 %v210, %v351
        %v356 = vmul.f32 %v217, %v351
        %v357 = vmul.f32 %v224, %v351
        %v358 = vmul.f32 %v231, %v351
        %v359 = vmul.f32 %v238, %v351
        %v361 = vcombine.high %v343, %v343
        %v363 = vunpack.c.l.s4 1966171168
        %v364 = vunpack.c.0.s8 %v363
        %v365 = vlaneseq
        %v366 = vshrl.u32 %v365, 7
        %v367 = vsub.s32 %v364, %v366
        %v368 = vrot.slane %v343, %v367
        %v370 = vunpack.c.l.s4 1966171168
        %v371 = vunpack.c.0.s8 %v370
        %v372 = vlaneseq
        %v373 = vshrl.u32 %v372, 7
        %v374 = vsub.s32 %v371, %v373
        %v375 = vrot.slane %v361, %v374
        %v376 = vcombine.high %v368, %v368
        %v377 = vcombine.high %v375, %v375
        %v379 = vunpack.c.l.s4 1966171168
        %v380 = vunpack.c.0.s8 %v379
        %v381 = vlaneseq
        %v382 = vshrl.u32 %v381, 7
        %v383 = vsub.s32 %v380, %v382
        %v384 = vrot.slane %v368, %v383
        %v386 = vunpack.c.l.s4 1966171168
        %v387 = vunpack.c.0.s8 %v386
        %v388 = vlaneseq
        %v389 = vshrl.u32 %v388, 7
        %v390 = vsub.s32 %v387, %v389
        %v391 = vrot.slane %v375, %v390
        %v393 = vunpack.c.l.s4 1966171168
        %v394 = vunpack.c.0.s8 %v393
        %v395 = vlaneseq
        %v396 = vshrl.u32 %v395, 7
        %v397 = vsub.s32 %v394, %v396
        %v398 = vrot.slane %v376, %v397
        %v400 = vunpack.c.l.s4 1966171168
        %v401 = vunpack.c.0.s8 %v400
        %v402 = vlaneseq
        %v403 = vshrl.u32 %v402, 7
        %v404 = vsub.s32 %v401, %v403
        %v405 = vrot.slane %v377, %v404
        %v406 = vcombine.high %v384, %v384
        %v407 = vcombine.high %v391, %v391
        %v408 = vcombine.high %v398, %v398
        %v409 = vcombine.high %v405, %v405
        %v410 = vlaneseq
        %v411 = vshrl.u32 %v410, 7
        %v412 = vsub.s32 0, %v411
        %v413 = vrot.slane %v384, %v412
        %v414 = vlaneseq
        %v415 = vshrl.u32 %v414, 7
        %v416 = vsub.s32 0, %v415
        %v417 = vrot.slane %v398, %v416
        %v418 = vlaneseq
        %v419 = vshrl.u32 %v418, 7
        %v420 = vsub.s32 0, %v419
        %v421 = vrot.slane %v406, %v420
        %v422 = vlaneseq
        %v423 = vshrl.u32 %v422, 7
        %v424 = vsub.s32 0, %v423
        %v425 = vrot.slane %v408, %v424
        %v426 = vlaneseq
        %v427 = vshrl.u32 %v426, 7
        %v428 = vsub.s32 0, %v427
        %v429 = vrot.slane %v391, %v428
        %v430 = vlaneseq
        %v431 = vshrl.u32 %v430, 7
        %v432 = vsub.s32 0, %v431
        %v433 = vrot.slane %v405, %v432
        %v434 = vlaneseq
        %v435 = vshrl.u32 %v434, 7
        %v436 = vsub.s32 0, %v435
        %v437 = vrot.slane %v407, %v436
        %v438 = vlaneseq
        %v439 = vshrl.u32 %v438, 7
        %v440 = vsub.s32 0, %v439
        %v441 = vrot.slane %v409, %v440
        %v450 = vadd.f32 %v295, %v413
        %v451 = vadd.f32 %v295, %v417
        %v452 = vadd.f32 %v295, %v421
        %v453 = vadd.f32 %v295, %v425
        %v454 = vadd.f32 %v295, %v429
        %v455 = vadd.f32 %v295, %v433
        %v456 = vadd.f32 %v295, %v437
        %v457 = vadd.f32 %v295, %v441
        %v458 = vadd.f32 %v450, %v352
        %v459 = vadd.f32 %v451, %v353
        %v460 = vadd.f32 %v452, %v354
        %v461 = vadd.f32 %v453, %v355
        %v462 = vadd.f32 %v454, %v356
        %v463 = vadd.f32 %v455, %v357
        %v464 = vadd.f32 %v456, %v358
        %v465 = vadd.f32 %v457, %v359
        %vm466 = vcmp.ge.f32.partialorder %v458, 0.0
        %vm467 = vcmp.ge.f32.partialorder %v459, 0.0
        %vm468 = vcmp.ge.f32.partialorder %v460, 0.0
        %vm469 = vcmp.ge.f32.partialorder %v461, 0.0
        %vm470 = vcmp.ge.f32.partialorder %v462, 0.0
        %vm471 = vcmp.ge.f32.partialorder %v463, 0.0
        %vm472 = vcmp.ge.f32.partialorder %v464, 0.0
        %vm473 = vcmp.ge.f32.partialorder %v465, 0.0
        %v474 = vmul.f32 %v458, 0.2
        %v475 = vmul.f32 %v459, 0.2
        %v476 = vmul.f32 %v460, 0.2
        %v477 = vmul.f32 %v461, 0.2
        %v478 = vmul.f32 %v462, 0.2
        %v479 = vmul.f32 %v463, 0.2
        %v480 = vmul.f32 %v464, 0.2
        %v481 = vmul.f32 %v465, 0.2
        %v482 = vsel %vm466, %v458, %v474
        %v483 = vsel %vm467, %v459, %v475
        %v484 = vsel %vm468, %v460, %v476
        %v485 = vsel %vm469, %v461, %v477
        %v486 = vsel %vm470, %v462, %v478
        %v487 = vsel %vm471, %v463, %v479
        %v488 = vsel %vm472, %v464, %v480
        %v489 = vsel %vm473, %v465, %v481
        %v490 = vlaneseq
        %v491 = vshrl.u32 %v490, 7
        %v492 = vsub.s32 0, %v491
        %v493 = vrot.slane %v244, %v492
        %v494 = vmul.f32 %v482, %v493
        %v495 = vmul.f32 %v483, %v493
        %v496 = vmul.f32 %v484, %v493
        %v497 = vmul.f32 %v485, %v493
        %v498 = vmul.f32 %v486, %v493
        %v499 = vmul.f32 %v487, %v493
        %v500 = vmul.f32 %v488, %v493
        %v501 = vmul.f32 %v489, %v493
        %vm502 = vcmask 261120
        %v503 = vsel %vm502, %v494, 0.0
        %504 = vadd.xlane.f32.xlu0 %v503
        %v505 = vpop.xlane.xlu0 %504
        %v506 = vsel %vm502, %v495, 0.0
        %507 = vadd.xlane.f32.xlu0 %v506
        %v508 = vpop.xlane.xlu0 %507
        %v509 = vsel %vm502, %v496, 0.0
        %510 = vadd.xlane.f32.xlu0 %v509
        %v511 = vpop.xlane.xlu0 %510
        %v512 = vsel %vm502, %v497, 0.0
        %513 = vadd.xlane.f32.xlu0 %v512
        %v514 = vpop.xlane.xlu0 %513
        %v515 = vsel %vm502, %v498, 0.0
        %516 = vadd.xlane.f32.xlu0 %v515
        %v517 = vpop.xlane.xlu0 %516
        %v518 = vsel %vm502, %v499, 0.0
        %519 = vadd.xlane.f32.xlu0 %v518
        %v520 = vpop.xlane.xlu0 %519
        %v521 = vsel %vm502, %v500, 0.0
        %522 = vadd.xlane.f32.xlu0 %v521
        %v523 = vpop.xlane.xlu0 %522
        %v524 = vsel %vm502, %v501, 0.0
        %525 = vadd.xlane.f32.xlu0 %v524
        %v526 = vpop.xlane.xlu0 %525
        %v535 = vlaneseq
        %v536 = vand.u32 %v535, 127
        %v537 = vlaneseq
        %v538 = vshrl.u32 %v537, 7
        %v539 = vsub.s32 %v536, %v538
        %v540 = vrot.slane %v505, %v539
        %v541 = vlaneseq
        %v542 = vshrl.u32 %v541, 7
        %v543 = vsub.s32 %v536, %v542
        %v544 = vrot.slane %v508, %v543
        %v545 = vlaneseq
        %v546 = vshrl.u32 %v545, 7
        %v547 = vsub.s32 %v536, %v546
        %v548 = vrot.slane %v511, %v547
        %v549 = vlaneseq
        %v550 = vshrl.u32 %v549, 7
        %v551 = vsub.s32 %v536, %v550
        %v552 = vrot.slane %v514, %v551
        %v553 = vlaneseq
        %v554 = vshrl.u32 %v553, 7
        %v555 = vsub.s32 %v536, %v554
        %v556 = vrot.slane %v517, %v555
        %v557 = vlaneseq
        %v558 = vshrl.u32 %v557, 7
        %v559 = vsub.s32 %v536, %v558
        %v560 = vrot.slane %v520, %v559
        %v561 = vlaneseq
        %v562 = vshrl.u32 %v561, 7
        %v563 = vsub.s32 %v536, %v562
        %v564 = vrot.slane %v523, %v563
        %v565 = vlaneseq
        %v566 = vshrl.u32 %v565, 7
        %v567 = vsub.s32 %v536, %v566
        %v568 = vrot.slane %v526, %v567
        %vm569 = vcmask 1041409
        %v570 = vsel %vm569, %v544, %v540
        %vm571 = vcmask 1042434
        %v572 = vsel %vm571, %v548, %v570
        %vm573 = vcmask 1043459
        %v574 = vsel %vm573, %v552, %v572
        %vm575 = vcmask 1044484
        %v576 = vsel %vm575, %v556, %v574
        %vm577 = vcmask 1045509
        %v578 = vsel %vm577, %v560, %v576
        %vm579 = vcmask 1046534
        %v580 = vsel %vm579, %v564, %v578
        %vm581 = vcmask 1047559
        %v582 = vsel %vm581, %v568, %v580
        %v584 = vsel %vm182, %v582, -1e+30
        %vm585 = vcmask 64512
        %v586 = vsel %vm585, %v584, -inf
        %587 = vmax.xlane.f32.xlu0 %v586
        %v588 = vpop.xlane.xlu0 %587
        %v589 = vsub.f32 %v584, %v588
        %v590 = vmul.f32 %v589, 1.442695
        %v591 = vpow.pop %v590
        %v592 = vsel %vm182, %v591, 0.0
        %v593 = vsel %vm585, %v592, 0.0
        %594 = vadd.xlane.f32.xlu0 %v593
        %v595 = vpop.xlane.xlu0 %594
        %v596 = vmax.f32 %v595, 1e-30
        %v597 = vrcp.pop %v596
        %v598 = vmul.f32 %v592, %v597
        %v599 = vpack.c.bf16 %v598, %v598
        %v600 = vpack.c.bf16 %v295, %v295
        %v601 = vlaneseq
        %v602 = vshrl.u32 %v601, 7
        %v603 = vsub.s32 0, %v602
        %v604 = vrot.slane %v245, %v603
        %v606 = vsel %vm585, %v599, 0
        %vm608 = vcmask 1043456
        %v610 = vsel %vm608, %v600, 0
        %612 = vmatprep.subr.bf16.mxu0 0
        %613 = vmatpush1.bf16.msra.mxu0 %v610
        %614 = vmatprep.subr.bf16.mxu0 0
        %615 = vmatpush1.bf16.msra.mxu0 0
        %616 = vmatprep.subr.bf16.mxu0 0
        %617 = vmatpush1.bf16.msra.mxu0 0
        %618 = vmatprep.subr.bf16.mxu0 0
        %619 = vmatpush1.bf16.msra.mxu0 0
        %620 = vmatprep.subr.bf16.mxu0 0
        %621 = vmatpush1.bf16.msra.mxu0 0
        %622 = vmatprep.subr.bf16.mxu0 0
        %623 = vmatpush1.bf16.msra.mxu0 0
        %624 = vmatprep.subr.bf16.mxu0 0
        %625 = vmatpush1.bf16.msra.mxu0 0
        %626 = vmatprep.subr.bf16.mxu0 0
        %627 = vmatpush1.bf16.msra.mxu0 0
        %628 = vmatprep.subr.bf16.mxu0 0
        %629 = vmatpush1.bf16.msra.mxu0 0
        %630 = vmatprep.subr.bf16.mxu0 0
        %631 = vmatpush1.bf16.msra.mxu0 0
        %632 = vmatprep.subr.bf16.mxu0 0
        %633 = vmatpush1.bf16.msra.mxu0 0
        %634 = vmatprep.subr.bf16.mxu0 0
        %635 = vmatpush1.bf16.msra.mxu0 0
        %636 = vmatprep.subr.bf16.mxu0 0
        %637 = vmatpush1.bf16.msra.mxu0 0
        %638 = vmatprep.subr.bf16.mxu0 0
        %639 = vmatpush1.bf16.msra.mxu0 0
        %640 = vmatprep.subr.bf16.mxu0 0
        %641 = vmatpush1.bf16.msra.mxu0 0
        %642 = vmatprep.subr.bf16.mxu0 0
        %643 = vmatpush1.bf16.msra.mxu0 0
        %644 = vmatprep.mubr.bf16.mxu0 0
        %645 = vmatmul.mubr.bf16.gmra.mrb[0].mxu0 %v606
        %v646 = vpop.f32.mrb[0].mxu0
        %v647 = vadd.f32 %v604, %v646
        %v648 = vpop.f32.mrb[0].mxu0
        %v649 = vpop.f32.mrb[0].mxu0
        %v650 = vpop.f32.mrb[0].mxu0
        %651 = vdwg.mxu0
        %v652 = vmax.f32 %v647, 0.0
        %v653 = vld [vmem:[#allocation5 + $0x38] sm:$0xff]
        %v654 = vld [vmem:[#allocation5 + $0x40] sm:$0xff]
        %v655 = vld [vmem:[#allocation5 + $0x48] sm:$0xff]
        %v656 = vld [vmem:[#allocation5 + $0x50] sm:$0xff]
        %v657 = vld [vmem:[#allocation5 + $0x58] sm:$0x1]
        %v658 = vld [vmem:[#allocation5 + $0x60] sm:$0xff]
        %v659 = vld [vmem:[#allocation5 + $0x68] sm:$0xff]
        %v660 = vld [vmem:[#allocation5 + $0x70] sm:$0xff]
        %v661 = vld [vmem:[#allocation5 + $0x78] sm:$0xff]
        %v662 = vld [vmem:[#allocation5 + $0x80] sm:$0x1]
        %v663 = vld [vmem:[#allocation5 + $0x88] sm:$0x1]
        %v664 = vld [vmem:[#allocation5 + $0x90] sm:$0x1]
        %v665 = vld [vmem:[#allocation5 + $0x98] sm:$0x1]
        %v666 = vpack.c.bf16 %v652, %v652
        %v667 = vpack.c.bf16 %v654, %v653
        %v668 = vpack.c.bf16 %v656, %v655
        %v669 = vlaneseq
        %v670 = vshrl.u32 %v669, 7
        %v671 = vsub.s32 0, %v670
        %v672 = vrot.slane %v657, %v671
        %v674 = vsel %vm502, %v666, 0
        %676 = vmatprep.subr.bf16.mxu0 0
        %677 = vmatpush1.bf16.msra.mxu0 %v667
        %678 = vmatprep.subr.bf16.mxu0 0
        %679 = vmatpush1.bf16.msra.mxu0 %v668
        %680 = vmatprep.subr.bf16.mxu0 0
        %681 = vmatpush1.bf16.msra.mxu0 0
        %682 = vmatprep.subr.bf16.mxu0 0
        %683 = vmatpush1.bf16.msra.mxu0 0
        %684 = vmatprep.subr.bf16.mxu0 0
        %685 = vmatpush1.bf16.msra.mxu0 0
        %686 = vmatprep.subr.bf16.mxu0 0
        %687 = vmatpush1.bf16.msra.mxu0 0
        %688 = vmatprep.subr.bf16.mxu0 0
        %689 = vmatpush1.bf16.msra.mxu0 0
        %690 = vmatprep.subr.bf16.mxu0 0
        %691 = vmatpush1.bf16.msra.mxu0 0
        %692 = vmatprep.subr.bf16.mxu0 0
        %693 = vmatpush1.bf16.msra.mxu0 0
        %694 = vmatprep.subr.bf16.mxu0 0
        %695 = vmatpush1.bf16.msra.mxu0 0
        %696 = vmatprep.subr.bf16.mxu0 0
        %697 = vmatpush1.bf16.msra.mxu0 0
        %698 = vmatprep.subr.bf16.mxu0 0
        %699 = vmatpush1.bf16.msra.mxu0 0
        %700 = vmatprep.subr.bf16.mxu0 0
        %701 = vmatpush1.bf16.msra.mxu0 0
        %702 = vmatprep.subr.bf16.mxu0 0
        %703 = vmatpush1.bf16.msra.mxu0 0
        %704 = vmatprep.subr.bf16.mxu0 0
        %705 = vmatpush1.bf16.msra.mxu0 0
        %706 = vmatprep.subr.bf16.mxu0 0
        %707 = vmatpush1.bf16.msra.mxu0 0
        %708 = vmatprep.mubr.bf16.mxu0 0
        %709 = vmatmul.mubr.bf16.gmra.mrb[0].mxu0 %v674
        %v710 = vpop.f32.mrb[0].mxu0
        %v711 = vadd.f32 %v672, %v710
        %v712 = vpop.f32.mrb[0].mxu0
        %v713 = vpop.f32.mrb[0].mxu0
        %v714 = vpop.f32.mrb[0].mxu0
        %715 = vdwg.mxu0
        %v716 = vpack.c.bf16 %v659, %v658
        %v717 = vpack.c.bf16 %v661, %v660
        %v718 = vlaneseq
        %v719 = vshrl.u32 %v718, 7
        %v720 = vsub.s32 0, %v719
        %v721 = vrot.slane %v662, %v720
        %722 = vmatprep.subr.bf16.mxu0 0
        %723 = vmatpush1.bf16.msra.mxu0 %v716
        %724 = vmatprep.subr.bf16.mxu0 0
        %725 = vmatpush1.bf16.msra.mxu0 %v717
        %726 = vmatprep.subr.bf16.mxu0 0
        %727 = vmatpush1.bf16.msra.mxu0 0
        %728 = vmatprep.subr.bf16.mxu0 0
        %729 = vmatpush1.bf16.msra.mxu0 0
        %730 = vmatprep.subr.bf16.mxu0 0
        %731 = vmatpush1.bf16.msra.mxu0 0
        %732 = vmatprep.subr.bf16.mxu0 0
        %733 = vmatpush1.bf16.msra.mxu0 0
        %734 = vmatprep.subr.bf16.mxu0 0
        %735 = vmatpush1.bf16.msra.mxu0 0
        %736 = vmatprep.subr.bf16.mxu0 0
        %737 = vmatpush1.bf16.msra.mxu0 0
        %738 = vmatprep.subr.bf16.mxu0 0
        %739 = vmatpush1.bf16.msra.mxu0 0
        %740 = vmatprep.subr.bf16.mxu0 0
        %741 = vmatpush1.bf16.msra.mxu0 0
        %742 = vmatprep.subr.bf16.mxu0 0
        %743 = vmatpush1.bf16.msra.mxu0 0
        %744 = vmatprep.subr.bf16.mxu0 0
        %745 = vmatpush1.bf16.msra.mxu0 0
        %746 = vmatprep.subr.bf16.mxu0 0
        %747 = vmatpush1.bf16.msra.mxu0 0
        %748 = vmatprep.subr.bf16.mxu0 0
        %749 = vmatpush1.bf16.msra.mxu0 0
        %750 = vmatprep.subr.bf16.mxu0 0
        %751 = vmatpush1.bf16.msra.mxu0 0
        %752 = vmatprep.subr.bf16.mxu0 0
        %753 = vmatpush1.bf16.msra.mxu0 0
        %754 = vmatprep.mubr.bf16.mxu0 0
        %755 = vmatmul.mubr.bf16.gmra.mrb[0].mxu0 %v674
        %v756 = vpop.f32.mrb[0].mxu0
        %v757 = vadd.f32 %v721, %v756
        %v758 = vpop.f32.mrb[0].mxu0
        %v759 = vpop.f32.mrb[0].mxu0
        %v760 = vpop.f32.mrb[0].mxu0
        %761 = vdwg.mxu0
        %v762 = vlaneseq
        %v763 = vshrl.u32 %v762, 7
        %v764 = vsub.s32 0, %v763
        %v765 = vrot.slane %v663, %v764
        %v766 = vmul.f32 %v189, %v765
        %v767 = vmul.f32 %v196, %v765
        %v768 = vmul.f32 %v203, %v765
        %v769 = vmul.f32 %v210, %v765
        %v770 = vmul.f32 %v217, %v765
        %v771 = vmul.f32 %v224, %v765
        %v772 = vmul.f32 %v231, %v765
        %v773 = vmul.f32 %v238, %v765
        %v775 = vcombine.high %v757, %v757
        %v777 = vunpack.c.l.s4 1966171168
        %v778 = vunpack.c.0.s8 %v777
        %v779 = vlaneseq
        %v780 = vshrl.u32 %v779, 7
        %v781 = vsub.s32 %v778, %v780
        %v782 = vrot.slane %v757, %v781
        %v784 = vunpack.c.l.s4 1966171168
        %v785 = vunpack.c.0.s8 %v784
        %v786 = vlaneseq
        %v787 = vshrl.u32 %v786, 7
        %v788 = vsub.s32 %v785, %v787
        %v789 = vrot.slane %v775, %v788
        %v790 = vcombine.high %v782, %v782
        %v791 = vcombine.high %v789, %v789
        %v793 = vunpack.c.l.s4 1966171168
        %v794 = vunpack.c.0.s8 %v793
        %v795 = vlaneseq
        %v796 = vshrl.u32 %v795, 7
        %v797 = vsub.s32 %v794, %v796
        %v798 = vrot.slane %v782, %v797
        %v800 = vunpack.c.l.s4 1966171168
        %v801 = vunpack.c.0.s8 %v800
        %v802 = vlaneseq
        %v803 = vshrl.u32 %v802, 7
        %v804 = vsub.s32 %v801, %v803
        %v805 = vrot.slane %v789, %v804
        %v807 = vunpack.c.l.s4 1966171168
        %v808 = vunpack.c.0.s8 %v807
        %v809 = vlaneseq
        %v810 = vshrl.u32 %v809, 7
        %v811 = vsub.s32 %v808, %v810
        %v812 = vrot.slane %v790, %v811
        %v814 = vunpack.c.l.s4 1966171168
        %v815 = vunpack.c.0.s8 %v814
        %v816 = vlaneseq
        %v817 = vshrl.u32 %v816, 7
        %v818 = vsub.s32 %v815, %v817
        %v819 = vrot.slane %v791, %v818
        %v820 = vcombine.high %v798, %v798
        %v821 = vcombine.high %v805, %v805
        %v822 = vcombine.high %v812, %v812
        %v823 = vcombine.high %v819, %v819
        %v824 = vlaneseq
        %v825 = vshrl.u32 %v824, 7
        %v826 = vsub.s32 0, %v825
        %v827 = vrot.slane %v798, %v826
        %v828 = vlaneseq
        %v829 = vshrl.u32 %v828, 7
        %v830 = vsub.s32 0, %v829
        %v831 = vrot.slane %v812, %v830
        %v832 = vlaneseq
        %v833 = vshrl.u32 %v832, 7
        %v834 = vsub.s32 0, %v833
        %v835 = vrot.slane %v820, %v834
        %v836 = vlaneseq
        %v837 = vshrl.u32 %v836, 7
        %v838 = vsub.s32 0, %v837
        %v839 = vrot.slane %v822, %v838
        %v840 = vlaneseq
        %v841 = vshrl.u32 %v840, 7
        %v842 = vsub.s32 0, %v841
        %v843 = vrot.slane %v805, %v842
        %v844 = vlaneseq
        %v845 = vshrl.u32 %v844, 7
        %v846 = vsub.s32 0, %v845
        %v847 = vrot.slane %v819, %v846
        %v848 = vlaneseq
        %v849 = vshrl.u32 %v848, 7
        %v850 = vsub.s32 0, %v849
        %v851 = vrot.slane %v821, %v850
        %v852 = vlaneseq
        %v853 = vshrl.u32 %v852, 7
        %v854 = vsub.s32 0, %v853
        %v855 = vrot.slane %v823, %v854
        %v864 = vadd.f32 %v711, %v827
        %v865 = vadd.f32 %v711, %v831
        %v866 = vadd.f32 %v711, %v835
        %v867 = vadd.f32 %v711, %v839
        %v868 = vadd.f32 %v711, %v843
        %v869 = vadd.f32 %v711, %v847
        %v870 = vadd.f32 %v711, %v851
        %v871 = vadd.f32 %v711, %v855
        %v872 = vadd.f32 %v864, %v766
        %v873 = vadd.f32 %v865, %v767
        %v874 = vadd.f32 %v866, %v768
        %v875 = vadd.f32 %v867, %v769
        %v876 = vadd.f32 %v868, %v770
        %v877 = vadd.f32 %v869, %v771
        %v878 = vadd.f32 %v870, %v772
        %v879 = vadd.f32 %v871, %v773
        %vm880 = vcmp.ge.f32.partialorder %v872, 0.0
        %vm881 = vcmp.ge.f32.partialorder %v873, 0.0
        %vm882 = vcmp.ge.f32.partialorder %v874, 0.0
        %vm883 = vcmp.ge.f32.partialorder %v875, 0.0
        %vm884 = vcmp.ge.f32.partialorder %v876, 0.0
        %vm885 = vcmp.ge.f32.partialorder %v877, 0.0
        %vm886 = vcmp.ge.f32.partialorder %v878, 0.0
        %vm887 = vcmp.ge.f32.partialorder %v879, 0.0
        %v888 = vmul.f32 %v872, 0.2
        %v889 = vmul.f32 %v873, 0.2
        %v890 = vmul.f32 %v874, 0.2
        %v891 = vmul.f32 %v875, 0.2
        %v892 = vmul.f32 %v876, 0.2
        %v893 = vmul.f32 %v877, 0.2
        %v894 = vmul.f32 %v878, 0.2
        %v895 = vmul.f32 %v879, 0.2
        %v896 = vsel %vm880, %v872, %v888
        %v897 = vsel %vm881, %v873, %v889
        %v898 = vsel %vm882, %v874, %v890
        %v899 = vsel %vm883, %v875, %v891
        %v900 = vsel %vm884, %v876, %v892
        %v901 = vsel %vm885, %v877, %v893
        %v902 = vsel %vm886, %v878, %v894
        %v903 = vsel %vm887, %v879, %v895
        %v904 = vlaneseq
        %v905 = vshrl.u32 %v904, 7
        %v906 = vsub.s32 0, %v905
        %v907 = vrot.slane %v664, %v906
        %v908 = vmul.f32 %v896, %v907
        %v909 = vmul.f32 %v897, %v907
        %v910 = vmul.f32 %v898, %v907
        %v911 = vmul.f32 %v899, %v907
        %v912 = vmul.f32 %v900, %v907
        %v913 = vmul.f32 %v901, %v907
        %v914 = vmul.f32 %v902, %v907
        %v915 = vmul.f32 %v903, %v907
        %v916 = vsel %vm502, %v908, 0.0
        %917 = vadd.xlane.f32.xlu0 %v916
        %v918 = vpop.xlane.xlu0 %917
        %v919 = vsel %vm502, %v909, 0.0
        %920 = vadd.xlane.f32.xlu0 %v919
        %v921 = vpop.xlane.xlu0 %920
        %v922 = vsel %vm502, %v910, 0.0
        %923 = vadd.xlane.f32.xlu0 %v922
        %v924 = vpop.xlane.xlu0 %923
        %v925 = vsel %vm502, %v911, 0.0
        %926 = vadd.xlane.f32.xlu0 %v925
        %v927 = vpop.xlane.xlu0 %926
        %v928 = vsel %vm502, %v912, 0.0
        %929 = vadd.xlane.f32.xlu0 %v928
        %v930 = vpop.xlane.xlu0 %929
        %v931 = vsel %vm502, %v913, 0.0
        %932 = vadd.xlane.f32.xlu0 %v931
        %v933 = vpop.xlane.xlu0 %932
        %v934 = vsel %vm502, %v914, 0.0
        %935 = vadd.xlane.f32.xlu0 %v934
        %v936 = vpop.xlane.xlu0 %935
        %v937 = vsel %vm502, %v915, 0.0
        %938 = vadd.xlane.f32.xlu0 %v937
        %v939 = vpop.xlane.xlu0 %938
        %v948 = vlaneseq
        %v949 = vshrl.u32 %v948, 7
        %v950 = vsub.s32 %v536, %v949
        %v951 = vrot.slane %v918, %v950
        %v952 = vlaneseq
        %v953 = vshrl.u32 %v952, 7
        %v954 = vsub.s32 %v536, %v953
        %v955 = vrot.slane %v921, %v954
        %v956 = vlaneseq
        %v957 = vshrl.u32 %v956, 7
        %v958 = vsub.s32 %v536, %v957
        %v959 = vrot.slane %v924, %v958
        %v960 = vlaneseq
        %v961 = vshrl.u32 %v960, 7
        %v962 = vsub.s32 %v536, %v961
        %v963 = vrot.slane %v927, %v962
        %v964 = vlaneseq
        %v965 = vshrl.u32 %v964, 7
        %v966 = vsub.s32 %v536, %v965
        %v967 = vrot.slane %v930, %v966
        %v968 = vlaneseq
        %v969 = vshrl.u32 %v968, 7
        %v970 = vsub.s32 %v536, %v969
        %v971 = vrot.slane %v933, %v970
        %v972 = vlaneseq
        %v973 = vshrl.u32 %v972, 7
        %v974 = vsub.s32 %v536, %v973
        %v975 = vrot.slane %v936, %v974
        %v976 = vlaneseq
        %v977 = vshrl.u32 %v976, 7
        %v978 = vsub.s32 %v536, %v977
        %v979 = vrot.slane %v939, %v978
        %v980 = vsel %vm569, %v955, %v951
        %v981 = vsel %vm571, %v959, %v980
        %v982 = vsel %vm573, %v963, %v981
        %v983 = vsel %vm575, %v967, %v982
        %v984 = vsel %vm577, %v971, %v983
        %v985 = vsel %vm579, %v975, %v984
        %v986 = vsel %vm581, %v979, %v985
        %v988 = vsel %vm182, %v986, -1e+30
        %v989 = vsel %vm585, %v988, -inf
        %990 = vmax.xlane.f32.xlu0 %v989
        %v991 = vpop.xlane.xlu0 %990
        %v992 = vsub.f32 %v988, %v991
        %v993 = vmul.f32 %v992, 1.442695
        %v994 = vpow.pop %v993
        %v995 = vsel %vm182, %v994, 0.0
        %v996 = vsel %vm585, %v995, 0.0
        %997 = vadd.xlane.f32.xlu0 %v996
        %v998 = vpop.xlane.xlu0 %997
        %v999 = vmax.f32 %v998, 1e-30
        %v1000 = vrcp.pop %v999
        %v1001 = vmul.f32 %v995, %v1000
        %v1002 = vpack.c.bf16 %v1001, %v1001
        %v1003 = vpack.c.bf16 %v711, %v711
        %v1004 = vlaneseq
        %v1005 = vshrl.u32 %v1004, 7
        %v1006 = vsub.s32 0, %v1005
        %v1007 = vrot.slane %v665, %v1006
        %v1009 = vsel %vm585, %v1002, 0
        %v1012 = vsel %vm608, %v1003, 0
        %1014 = vmatprep.subr.bf16.mxu0 0
        %1015 = vmatpush1.bf16.msra.mxu0 %v1012
        %1016 = vmatprep.subr.bf16.mxu0 0
        %1017 = vmatpush1.bf16.msra.mxu0 0
        %1018 = vmatprep.subr.bf16.mxu0 0
        %1019 = vmatpush1.bf16.msra.mxu0 0
        %1020 = vmatprep.subr.bf16.mxu0 0
        %1021 = vmatpush1.bf16.msra.mxu0 0
        %1022 = vmatprep.subr.bf16.mxu0 0
        %1023 = vmatpush1.bf16.msra.mxu0 0
        %1024 = vmatprep.subr.bf16.mxu0 0
        %1025 = vmatpush1.bf16.msra.mxu0 0
        %1026 = vmatprep.subr.bf16.mxu0 0
        %1027 = vmatpush1.bf16.msra.mxu0 0
        %1028 = vmatprep.subr.bf16.mxu0 0
        %1029 = vmatpush1.bf16.msra.mxu0 0
        %1030 = vmatprep.subr.bf16.mxu0 0
        %1031 = vmatpush1.bf16.msra.mxu0 0
        %1032 = vmatprep.subr.bf16.mxu0 0
        %1033 = vmatpush1.bf16.msra.mxu0 0
        %1034 = vmatprep.subr.bf16.mxu0 0
        %1035 = vmatpush1.bf16.msra.mxu0 0
        %1036 = vmatprep.subr.bf16.mxu0 0
        %1037 = vmatpush1.bf16.msra.mxu0 0
        %1038 = vmatprep.subr.bf16.mxu0 0
        %1039 = vmatpush1.bf16.msra.mxu0 0
        %1040 = vmatprep.subr.bf16.mxu0 0
        %1041 = vmatpush1.bf16.msra.mxu0 0
        %1042 = vmatprep.subr.bf16.mxu0 0
        %1043 = vmatpush1.bf16.msra.mxu0 0
        %1044 = vmatprep.subr.bf16.mxu0 0
        %1045 = vmatpush1.bf16.msra.mxu0 0
        %1046 = vmatprep.mubr.bf16.mxu0 0
        %1047 = vmatmul.mubr.bf16.gmra.mrb[0].mxu0 %v1009
        %v1048 = vpop.f32.mrb[0].mxu0
        %v1049 = vadd.f32 %v1007, %v1048
        %v1050 = vpop.f32.mrb[0].mxu0
        %v1051 = vpop.f32.mrb[0].mxu0
        %v1052 = vpop.f32.mrb[0].mxu0
        %1053 = vdwg.mxu0
        %v1054 = vmax.f32 %v1049, 0.0
        %v1055 = vld [vmem:[#allocation5 + $0xa0] sm:$0xff]
        %v1056 = vld [vmem:[#allocation5 + $0xa8] sm:$0xff]
        %v1057 = vld [vmem:[#allocation5 + $0xb0] sm:$0xff]
        %v1058 = vld [vmem:[#allocation5 + $0xb8] sm:$0xff]
        %v1059 = vld [vmem:[#allocation5 + $0xc0] sm:$0x1]
        %v1060 = vld [vmem:[#allocation5 + $0xc8] sm:$0xff]
        %v1061 = vld [vmem:[#allocation5 + $0xd0] sm:$0xff]
        %v1062 = vld [vmem:[#allocation5 + $0xd8] sm:$0xff]
        %v1063 = vld [vmem:[#allocation5 + $0xe0] sm:$0xff]
        %v1064 = vld [vmem:[#allocation5 + $0xe8] sm:$0x1]
        %v1065 = vld [vmem:[#allocation5 + $0xf0] sm:$0x1]
        %v1066 = vld [vmem:[#allocation5 + $0xf8] sm:$0x1]
        %v1067 = vld [vmem:[#allocation5 + $0x100] sm:$0x1]
        %v1068 = vpack.c.bf16 %v1054, %v1054
        %v1069 = vpack.c.bf16 %v1056, %v1055
        %v1070 = vpack.c.bf16 %v1058, %v1057
        %v1071 = vlaneseq
        %v1072 = vshrl.u32 %v1071, 7
        %v1073 = vsub.s32 0, %v1072
        %v1074 = vrot.slane %v1059, %v1073
        %v1076 = vsel %vm502, %v1068, 0
        %1078 = vmatprep.subr.bf16.mxu0 0
        %1079 = vmatpush1.bf16.msra.mxu0 %v1069
        %1080 = vmatprep.subr.bf16.mxu0 0
        %1081 = vmatpush1.bf16.msra.mxu0 %v1070
        %1082 = vmatprep.subr.bf16.mxu0 0
        %1083 = vmatpush1.bf16.msra.mxu0 0
        %1084 = vmatprep.subr.bf16.mxu0 0
        %1085 = vmatpush1.bf16.msra.mxu0 0
        %1086 = vmatprep.subr.bf16.mxu0 0
        %1087 = vmatpush1.bf16.msra.mxu0 0
        %1088 = vmatprep.subr.bf16.mxu0 0
        %1089 = vmatpush1.bf16.msra.mxu0 0
        %1090 = vmatprep.subr.bf16.mxu0 0
        %1091 = vmatpush1.bf16.msra.mxu0 0
        %1092 = vmatprep.subr.bf16.mxu0 0
        %1093 = vmatpush1.bf16.msra.mxu0 0
        %1094 = vmatprep.subr.bf16.mxu0 0
        %1095 = vmatpush1.bf16.msra.mxu0 0
        %1096 = vmatprep.subr.bf16.mxu0 0
        %1097 = vmatpush1.bf16.msra.mxu0 0
        %1098 = vmatprep.subr.bf16.mxu0 0
        %1099 = vmatpush1.bf16.msra.mxu0 0
        %1100 = vmatprep.subr.bf16.mxu0 0
        %1101 = vmatpush1.bf16.msra.mxu0 0
        %1102 = vmatprep.subr.bf16.mxu0 0
        %1103 = vmatpush1.bf16.msra.mxu0 0
        %1104 = vmatprep.subr.bf16.mxu0 0
        %1105 = vmatpush1.bf16.msra.mxu0 0
        %1106 = vmatprep.subr.bf16.mxu0 0
        %1107 = vmatpush1.bf16.msra.mxu0 0
        %1108 = vmatprep.subr.bf16.mxu0 0
        %1109 = vmatpush1.bf16.msra.mxu0 0
        %1110 = vmatprep.mubr.bf16.mxu0 0
        %1111 = vmatmul.mubr.bf16.gmra.mrb[0].mxu0 %v1076
        %v1112 = vpop.f32.mrb[0].mxu0
        %v1113 = vadd.f32 %v1074, %v1112
        %v1114 = vpop.f32.mrb[0].mxu0
        %v1115 = vpop.f32.mrb[0].mxu0
        %v1116 = vpop.f32.mrb[0].mxu0
        %1117 = vdwg.mxu0
        %v1118 = vpack.c.bf16 %v1061, %v1060
        %v1119 = vpack.c.bf16 %v1063, %v1062
        %v1120 = vlaneseq
        %v1121 = vshrl.u32 %v1120, 7
        %v1122 = vsub.s32 0, %v1121
        %v1123 = vrot.slane %v1064, %v1122
        %1124 = vmatprep.subr.bf16.mxu0 0
        %1125 = vmatpush1.bf16.msra.mxu0 %v1118
        %1126 = vmatprep.subr.bf16.mxu0 0
        %1127 = vmatpush1.bf16.msra.mxu0 %v1119
        %1128 = vmatprep.subr.bf16.mxu0 0
        %1129 = vmatpush1.bf16.msra.mxu0 0
        %1130 = vmatprep.subr.bf16.mxu0 0
        %1131 = vmatpush1.bf16.msra.mxu0 0
        %1132 = vmatprep.subr.bf16.mxu0 0
        %1133 = vmatpush1.bf16.msra.mxu0 0
        %1134 = vmatprep.subr.bf16.mxu0 0
        %1135 = vmatpush1.bf16.msra.mxu0 0
        %1136 = vmatprep.subr.bf16.mxu0 0
        %1137 = vmatpush1.bf16.msra.mxu0 0
        %1138 = vmatprep.subr.bf16.mxu0 0
        %1139 = vmatpush1.bf16.msra.mxu0 0
        %1140 = vmatprep.subr.bf16.mxu0 0
        %1141 = vmatpush1.bf16.msra.mxu0 0
        %1142 = vmatprep.subr.bf16.mxu0 0
        %1143 = vmatpush1.bf16.msra.mxu0 0
        %1144 = vmatprep.subr.bf16.mxu0 0
        %1145 = vmatpush1.bf16.msra.mxu0 0
        %1146 = vmatprep.subr.bf16.mxu0 0
        %1147 = vmatpush1.bf16.msra.mxu0 0
        %1148 = vmatprep.subr.bf16.mxu0 0
        %1149 = vmatpush1.bf16.msra.mxu0 0
        %1150 = vmatprep.subr.bf16.mxu0 0
        %1151 = vmatpush1.bf16.msra.mxu0 0
        %1152 = vmatprep.subr.bf16.mxu0 0
        %1153 = vmatpush1.bf16.msra.mxu0 0
        %1154 = vmatprep.subr.bf16.mxu0 0
        %1155 = vmatpush1.bf16.msra.mxu0 0
        %1156 = vmatprep.mubr.bf16.mxu0 0
        %1157 = vmatmul.mubr.bf16.gmra.mrb[0].mxu0 %v1076
        %v1158 = vpop.f32.mrb[0].mxu0
        %v1159 = vadd.f32 %v1123, %v1158
        %v1160 = vpop.f32.mrb[0].mxu0
        %v1161 = vpop.f32.mrb[0].mxu0
        %v1162 = vpop.f32.mrb[0].mxu0
        %1163 = vdwg.mxu0
        %v1164 = vlaneseq
        %v1165 = vshrl.u32 %v1164, 7
        %v1166 = vsub.s32 0, %v1165
        %v1167 = vrot.slane %v1065, %v1166
        %v1168 = vmul.f32 %v189, %v1167
        %v1169 = vmul.f32 %v196, %v1167
        %v1170 = vmul.f32 %v203, %v1167
        %v1171 = vmul.f32 %v210, %v1167
        %v1172 = vmul.f32 %v217, %v1167
        %v1173 = vmul.f32 %v224, %v1167
        %v1174 = vmul.f32 %v231, %v1167
        %v1175 = vmul.f32 %v238, %v1167
        %v1177 = vcombine.high %v1159, %v1159
        %v1179 = vunpack.c.l.s4 1966171168
        %v1180 = vunpack.c.0.s8 %v1179
        %v1181 = vlaneseq
        %v1182 = vshrl.u32 %v1181, 7
        %v1183 = vsub.s32 %v1180, %v1182
        %v1184 = vrot.slane %v1159, %v1183
        %v1186 = vunpack.c.l.s4 1966171168
        %v1187 = vunpack.c.0.s8 %v1186
        %v1188 = vlaneseq
        %v1189 = vshrl.u32 %v1188, 7
        %v1190 = vsub.s32 %v1187, %v1189
        %v1191 = vrot.slane %v1177, %v1190
        %v1192 = vcombine.high %v1184, %v1184
        %v1193 = vcombine.high %v1191, %v1191
        %v1195 = vunpack.c.l.s4 1966171168
        %v1196 = vunpack.c.0.s8 %v1195
        %v1197 = vlaneseq
        %v1198 = vshrl.u32 %v1197, 7
        %v1199 = vsub.s32 %v1196, %v1198
        %v1200 = vrot.slane %v1184, %v1199
        %v1202 = vunpack.c.l.s4 1966171168
        %v1203 = vunpack.c.0.s8 %v1202
        %v1204 = vlaneseq
        %v1205 = vshrl.u32 %v1204, 7
        %v1206 = vsub.s32 %v1203, %v1205
        %v1207 = vrot.slane %v1191, %v1206
        %v1209 = vunpack.c.l.s4 1966171168
        %v1210 = vunpack.c.0.s8 %v1209
        %v1211 = vlaneseq
        %v1212 = vshrl.u32 %v1211, 7
        %v1213 = vsub.s32 %v1210, %v1212
        %v1214 = vrot.slane %v1192, %v1213
        %v1216 = vunpack.c.l.s4 1966171168
        %v1217 = vunpack.c.0.s8 %v1216
        %v1218 = vlaneseq
        %v1219 = vshrl.u32 %v1218, 7
        %v1220 = vsub.s32 %v1217, %v1219
        %v1221 = vrot.slane %v1193, %v1220
        %v1222 = vcombine.high %v1200, %v1200
        %v1223 = vcombine.high %v1207, %v1207
        %v1224 = vcombine.high %v1214, %v1214
        %v1225 = vcombine.high %v1221, %v1221
        %v1226 = vlaneseq
        %v1227 = vshrl.u32 %v1226, 7
        %v1228 = vsub.s32 0, %v1227
        %v1229 = vrot.slane %v1200, %v1228
        %v1230 = vlaneseq
        %v1231 = vshrl.u32 %v1230, 7
        %v1232 = vsub.s32 0, %v1231
        %v1233 = vrot.slane %v1214, %v1232
        %v1234 = vlaneseq
        %v1235 = vshrl.u32 %v1234, 7
        %v1236 = vsub.s32 0, %v1235
        %v1237 = vrot.slane %v1222, %v1236
        %v1238 = vlaneseq
        %v1239 = vshrl.u32 %v1238, 7
        %v1240 = vsub.s32 0, %v1239
        %v1241 = vrot.slane %v1224, %v1240
        %v1242 = vlaneseq
        %v1243 = vshrl.u32 %v1242, 7
        %v1244 = vsub.s32 0, %v1243
        %v1245 = vrot.slane %v1207, %v1244
        %v1246 = vlaneseq
        %v1247 = vshrl.u32 %v1246, 7
        %v1248 = vsub.s32 0, %v1247
        %v1249 = vrot.slane %v1221, %v1248
        %v1250 = vlaneseq
        %v1251 = vshrl.u32 %v1250, 7
        %v1252 = vsub.s32 0, %v1251
        %v1253 = vrot.slane %v1223, %v1252
        %v1254 = vlaneseq
        %v1255 = vshrl.u32 %v1254, 7
        %v1256 = vsub.s32 0, %v1255
        %v1257 = vrot.slane %v1225, %v1256
        %v1266 = vadd.f32 %v1113, %v1229
        %v1267 = vadd.f32 %v1113, %v1233
        %v1268 = vadd.f32 %v1113, %v1237
        %v1269 = vadd.f32 %v1113, %v1241
        %v1270 = vadd.f32 %v1113, %v1245
        %v1271 = vadd.f32 %v1113, %v1249
        %v1272 = vadd.f32 %v1113, %v1253
        %v1273 = vadd.f32 %v1113, %v1257
        %v1274 = vadd.f32 %v1266, %v1168
        %v1275 = vadd.f32 %v1267, %v1169
        %v1276 = vadd.f32 %v1268, %v1170
        %v1277 = vadd.f32 %v1269, %v1171
        %v1278 = vadd.f32 %v1270, %v1172
        %v1279 = vadd.f32 %v1271, %v1173
        %v1280 = vadd.f32 %v1272, %v1174
        %v1281 = vadd.f32 %v1273, %v1175
        %vm1282 = vcmp.ge.f32.partialorder %v1274, 0.0
        %vm1283 = vcmp.ge.f32.partialorder %v1275, 0.0
        %vm1284 = vcmp.ge.f32.partialorder %v1276, 0.0
        %vm1285 = vcmp.ge.f32.partialorder %v1277, 0.0
        %vm1286 = vcmp.ge.f32.partialorder %v1278, 0.0
        %vm1287 = vcmp.ge.f32.partialorder %v1279, 0.0
        %vm1288 = vcmp.ge.f32.partialorder %v1280, 0.0
        %vm1289 = vcmp.ge.f32.partialorder %v1281, 0.0
        %v1290 = vmul.f32 %v1274, 0.2
        %v1291 = vmul.f32 %v1275, 0.2
        %v1292 = vmul.f32 %v1276, 0.2
        %v1293 = vmul.f32 %v1277, 0.2
        %v1294 = vmul.f32 %v1278, 0.2
        %v1295 = vmul.f32 %v1279, 0.2
        %v1296 = vmul.f32 %v1280, 0.2
        %v1297 = vmul.f32 %v1281, 0.2
        %v1298 = vsel %vm1282, %v1274, %v1290
        %v1299 = vsel %vm1283, %v1275, %v1291
        %v1300 = vsel %vm1284, %v1276, %v1292
        %v1301 = vsel %vm1285, %v1277, %v1293
        %v1302 = vsel %vm1286, %v1278, %v1294
        %v1303 = vsel %vm1287, %v1279, %v1295
        %v1304 = vsel %vm1288, %v1280, %v1296
        %v1305 = vsel %vm1289, %v1281, %v1297
        %v1306 = vlaneseq
        %v1307 = vshrl.u32 %v1306, 7
        %v1308 = vsub.s32 0, %v1307
        %v1309 = vrot.slane %v1066, %v1308
        %v1310 = vmul.f32 %v1298, %v1309
        %v1311 = vmul.f32 %v1299, %v1309
        %v1312 = vmul.f32 %v1300, %v1309
        %v1313 = vmul.f32 %v1301, %v1309
        %v1314 = vmul.f32 %v1302, %v1309
        %v1315 = vmul.f32 %v1303, %v1309
        %v1316 = vmul.f32 %v1304, %v1309
        %v1317 = vmul.f32 %v1305, %v1309
        %v1318 = vsel %vm502, %v1310, 0.0
        %1319 = vadd.xlane.f32.xlu0 %v1318
        %v1320 = vpop.xlane.xlu0 %1319
        %v1321 = vsel %vm502, %v1311, 0.0
        %1322 = vadd.xlane.f32.xlu0 %v1321
        %v1323 = vpop.xlane.xlu0 %1322
        %v1324 = vsel %vm502, %v1312, 0.0
        %1325 = vadd.xlane.f32.xlu0 %v1324
        %v1326 = vpop.xlane.xlu0 %1325
        %v1327 = vsel %vm502, %v1313, 0.0
        %1328 = vadd.xlane.f32.xlu0 %v1327
        %v1329 = vpop.xlane.xlu0 %1328
        %v1330 = vsel %vm502, %v1314, 0.0
        %1331 = vadd.xlane.f32.xlu0 %v1330
        %v1332 = vpop.xlane.xlu0 %1331
        %v1333 = vsel %vm502, %v1315, 0.0
        %1334 = vadd.xlane.f32.xlu0 %v1333
        %v1335 = vpop.xlane.xlu0 %1334
        %v1336 = vsel %vm502, %v1316, 0.0
        %1337 = vadd.xlane.f32.xlu0 %v1336
        %v1338 = vpop.xlane.xlu0 %1337
        %v1339 = vsel %vm502, %v1317, 0.0
        %1340 = vadd.xlane.f32.xlu0 %v1339
        %v1341 = vpop.xlane.xlu0 %1340
        %v1350 = vlaneseq
        %v1351 = vshrl.u32 %v1350, 7
        %v1352 = vsub.s32 %v536, %v1351
        %v1353 = vrot.slane %v1320, %v1352
        %v1354 = vlaneseq
        %v1355 = vshrl.u32 %v1354, 7
        %v1356 = vsub.s32 %v536, %v1355
        %v1357 = vrot.slane %v1323, %v1356
        %v1358 = vlaneseq
        %v1359 = vshrl.u32 %v1358, 7
        %v1360 = vsub.s32 %v536, %v1359
        %v1361 = vrot.slane %v1326, %v1360
        %v1362 = vlaneseq
        %v1363 = vshrl.u32 %v1362, 7
        %v1364 = vsub.s32 %v536, %v1363
        %v1365 = vrot.slane %v1329, %v1364
        %v1366 = vlaneseq
        %v1367 = vshrl.u32 %v1366, 7
        %v1368 = vsub.s32 %v536, %v1367
        %v1369 = vrot.slane %v1332, %v1368
        %v1370 = vlaneseq
        %v1371 = vshrl.u32 %v1370, 7
        %v1372 = vsub.s32 %v536, %v1371
        %v1373 = vrot.slane %v1335, %v1372
        %v1374 = vlaneseq
        %v1375 = vshrl.u32 %v1374, 7
        %v1376 = vsub.s32 %v536, %v1375
        %v1377 = vrot.slane %v1338, %v1376
        %v1378 = vlaneseq
        %v1379 = vshrl.u32 %v1378, 7
        %v1380 = vsub.s32 %v536, %v1379
        %v1381 = vrot.slane %v1341, %v1380
        %v1382 = vsel %vm569, %v1357, %v1353
        %v1383 = vsel %vm571, %v1361, %v1382
        %v1384 = vsel %vm573, %v1365, %v1383
        %v1385 = vsel %vm575, %v1369, %v1384
        %v1386 = vsel %vm577, %v1373, %v1385
        %v1387 = vsel %vm579, %v1377, %v1386
        %v1388 = vsel %vm581, %v1381, %v1387
        %v1390 = vsel %vm182, %v1388, -1e+30
        %v1391 = vsel %vm585, %v1390, -inf
        %1392 = vmax.xlane.f32.xlu0 %v1391
        %v1393 = vpop.xlane.xlu0 %1392
        %v1394 = vsub.f32 %v1390, %v1393
        %v1395 = vmul.f32 %v1394, 1.442695
        %v1396 = vpow.pop %v1395
        %v1397 = vsel %vm182, %v1396, 0.0
        %v1398 = vsel %vm585, %v1397, 0.0
        %1399 = vadd.xlane.f32.xlu0 %v1398
        %v1400 = vpop.xlane.xlu0 %1399
        %v1401 = vmax.f32 %v1400, 1e-30
        %v1402 = vrcp.pop %v1401
        %v1403 = vmul.f32 %v1397, %v1402
        %v1404 = vpack.c.bf16 %v1403, %v1403
        %v1405 = vpack.c.bf16 %v1113, %v1113
        %v1406 = vlaneseq
        %v1407 = vshrl.u32 %v1406, 7
        %v1408 = vsub.s32 0, %v1407
        %v1409 = vrot.slane %v1067, %v1408
        %v1411 = vsel %vm585, %v1404, 0
        %v1414 = vsel %vm608, %v1405, 0
        %1416 = vmatprep.subr.bf16.mxu0 0
        %1417 = vmatpush1.bf16.msra.mxu0 %v1414
        %1418 = vmatprep.subr.bf16.mxu0 0
        %1419 = vmatpush1.bf16.msra.mxu0 0
        %1420 = vmatprep.subr.bf16.mxu0 0
        %1421 = vmatpush1.bf16.msra.mxu0 0
        %1422 = vmatprep.subr.bf16.mxu0 0
        %1423 = vmatpush1.bf16.msra.mxu0 0
        %1424 = vmatprep.subr.bf16.mxu0 0
        %1425 = vmatpush1.bf16.msra.mxu0 0
        %1426 = vmatprep.subr.bf16.mxu0 0
        %1427 = vmatpush1.bf16.msra.mxu0 0
        %1428 = vmatprep.subr.bf16.mxu0 0
        %1429 = vmatpush1.bf16.msra.mxu0 0
        %1430 = vmatprep.subr.bf16.mxu0 0
        %1431 = vmatpush1.bf16.msra.mxu0 0
        %1432 = vmatprep.subr.bf16.mxu0 0
        %1433 = vmatpush1.bf16.msra.mxu0 0
        %1434 = vmatprep.subr.bf16.mxu0 0
        %1435 = vmatpush1.bf16.msra.mxu0 0
        %1436 = vmatprep.subr.bf16.mxu0 0
        %1437 = vmatpush1.bf16.msra.mxu0 0
        %1438 = vmatprep.subr.bf16.mxu0 0
        %1439 = vmatpush1.bf16.msra.mxu0 0
        %1440 = vmatprep.subr.bf16.mxu0 0
        %1441 = vmatpush1.bf16.msra.mxu0 0
        %1442 = vmatprep.subr.bf16.mxu0 0
        %1443 = vmatpush1.bf16.msra.mxu0 0
        %1444 = vmatprep.subr.bf16.mxu0 0
        %1445 = vmatpush1.bf16.msra.mxu0 0
        %1446 = vmatprep.subr.bf16.mxu0 0
        %1447 = vmatpush1.bf16.msra.mxu0 0
        %1448 = vmatprep.mubr.bf16.mxu0 0
        %1449 = vmatmul.mubr.bf16.gmra.mrb[0].mxu0 %v1411
        %v1450 = vpop.f32.mrb[0].mxu0
        %v1451 = vadd.f32 %v1409, %v1450
        %v1452 = vpop.f32.mrb[0].mxu0
        %v1453 = vpop.f32.mrb[0].mxu0
        %v1454 = vpop.f32.mrb[0].mxu0
        %1455 = vdwg.mxu0
        %v1456 = vmax.f32 %v1451, 0.0
        %v1457 = vpack.c.bf16 %v181, %v181
        %v1458 = vpack.c.bf16 %v1456, %v1456
        %v1460 = vsel %vm585, %v1457, 0
        %v1463 = vsel %vm608, %v1458, 0
        %1465 = vmatprep.subr.bf16.mxu0 0
        %1466 = vmatpush1.bf16.msra.mxu0 %v1463
        %1467 = vmatprep.subr.bf16.mxu0 0
        %1468 = vmatpush1.bf16.msra.mxu0 0
        %1469 = vmatprep.subr.bf16.mxu0 0
        %1470 = vmatpush1.bf16.msra.mxu0 0
        %1471 = vmatprep.subr.bf16.mxu0 0
        %1472 = vmatpush1.bf16.msra.mxu0 0
        %1473 = vmatprep.subr.bf16.mxu0 0
        %1474 = vmatpush1.bf16.msra.mxu0 0
        %1475 = vmatprep.subr.bf16.mxu0 0
        %1476 = vmatpush1.bf16.msra.mxu0 0
        %1477 = vmatprep.subr.bf16.mxu0 0
        %1478 = vmatpush1.bf16.msra.mxu0 0
        %1479 = vmatprep.subr.bf16.mxu0 0
        %1480 = vmatpush1.bf16.msra.mxu0 0
        %1481 = vmatprep.subr.bf16.mxu0 0
        %1482 = vmatpush1.bf16.msra.mxu0 0
        %1483 = vmatprep.subr.bf16.mxu0 0
        %1484 = vmatpush1.bf16.msra.mxu0 0
        %1485 = vmatprep.subr.bf16.mxu0 0
        %1486 = vmatpush1.bf16.msra.mxu0 0
        %1487 = vmatprep.subr.bf16.mxu0 0
        %1488 = vmatpush1.bf16.msra.mxu0 0
        %1489 = vmatprep.subr.bf16.mxu0 0
        %1490 = vmatpush1.bf16.msra.mxu0 0
        %1491 = vmatprep.subr.bf16.mxu0 0
        %1492 = vmatpush1.bf16.msra.mxu0 0
        %1493 = vmatprep.subr.bf16.mxu0 0
        %1494 = vmatpush1.bf16.msra.mxu0 0
        %1495 = vmatprep.subr.bf16.mxu0 0
        %1496 = vmatpush1.bf16.msra.mxu0 0
        %1497 = vmatprep.mubr.bf16.mxu0 0
        %1498 = vmatmul.mubr.bf16.gmra.mrb[0].mxu0 %v1460
        %v1499 = vpop.f32.mrb[0].mxu0
        %v1500 = vadd.f32 0.0, %v1499
        %v1501 = vpop.f32.mrb[0].mxu0
        %v1502 = vpop.f32.mrb[0].mxu0
        %v1503 = vpop.f32.mrb[0].mxu0
        %1504 = vdwg.mxu0
        %v1505 = vld [vmem:[#allocation5 + $0x108] sm:$0xff]
        %v1506 = vld [vmem:[#allocation5 + $0x110] sm:$0xff]
        %v1507 = vld [vmem:[#allocation5 + $0x118] sm:$0xff]
        %v1508 = vld [vmem:[#allocation5 + $0x120] sm:$0xff]
        %v1509 = vpack.c.bf16 %v1500, %v1500
        %v1510 = vpack.c.bf16 %v1506, %v1505
        %v1511 = vpack.c.bf16 %v1508, %v1507
        %v1512 = vld [vmem:[#allocation5 + $0x128] sm:$0x1]
        %v1513 = vlaneseq
        %v1514 = vshrl.u32 %v1513, 7
        %v1515 = vsub.s32 0, %v1514
        %v1516 = vrot.slane %v1512, %v1515
        %v1518 = vsel %vm502, %v1509, 0
        %1520 = vmatprep.subr.bf16.mxu0 0
        %1521 = vmatpush1.bf16.msra.mxu0 %v1510
        %1522 = vmatprep.subr.bf16.mxu0 0
        %1523 = vmatpush1.bf16.msra.mxu0 %v1511
        %1524 = vmatprep.subr.bf16.mxu0 0
        %1525 = vmatpush1.bf16.msra.mxu0 0
        %1526 = vmatprep.subr.bf16.mxu0 0
        %1527 = vmatpush1.bf16.msra.mxu0 0
        %1528 = vmatprep.subr.bf16.mxu0 0
        %1529 = vmatpush1.bf16.msra.mxu0 0
        %1530 = vmatprep.subr.bf16.mxu0 0
        %1531 = vmatpush1.bf16.msra.mxu0 0
        %1532 = vmatprep.subr.bf16.mxu0 0
        %1533 = vmatpush1.bf16.msra.mxu0 0
        %1534 = vmatprep.subr.bf16.mxu0 0
        %1535 = vmatpush1.bf16.msra.mxu0 0
        %1536 = vmatprep.subr.bf16.mxu0 0
        %1537 = vmatpush1.bf16.msra.mxu0 0
        %1538 = vmatprep.subr.bf16.mxu0 0
        %1539 = vmatpush1.bf16.msra.mxu0 0
        %1540 = vmatprep.subr.bf16.mxu0 0
        %1541 = vmatpush1.bf16.msra.mxu0 0
        %1542 = vmatprep.subr.bf16.mxu0 0
        %1543 = vmatpush1.bf16.msra.mxu0 0
        %1544 = vmatprep.subr.bf16.mxu0 0
        %1545 = vmatpush1.bf16.msra.mxu0 0
        %1546 = vmatprep.subr.bf16.mxu0 0
        %1547 = vmatpush1.bf16.msra.mxu0 0
        %1548 = vmatprep.subr.bf16.mxu0 0
        %1549 = vmatpush1.bf16.msra.mxu0 0
        %1550 = vmatprep.subr.bf16.mxu0 0
        %1551 = vmatpush1.bf16.msra.mxu0 0
        %1552 = vmatprep.mubr.bf16.mxu0 0
        %1553 = vmatmul.mubr.bf16.gmra.mrb[0].mxu0 %v1518
        %v1554 = vpop.f32.mrb[0].mxu0
        %v1555 = vadd.f32 %v1516, %v1554
        %v1556 = vpop.f32.mrb[0].mxu0
        %v1557 = vpop.f32.mrb[0].mxu0
        %v1558 = vpop.f32.mrb[0].mxu0
        %1559 = vdwg.mxu0
        %v1560 = vmax.f32 %v1555, 0.0
        %v1561 = vld [vmem:[#allocation5 + $0x130] sm:$0xff]
        %v1562 = vld [vmem:[#allocation5 + $0x138] sm:$0xff]
        %v1563 = vld [vmem:[#allocation5 + $0x140] sm:$0xff]
        %v1564 = vld [vmem:[#allocation5 + $0x148] sm:$0xff]
        %v1565 = vpack.c.bf16 %v1560, %v1560
        %v1566 = vpack.c.bf16 %v1562, %v1561
        %v1567 = vpack.c.bf16 %v1564, %v1563
        %v1568 = vld [vmem:[#allocation5 + $0x150] sm:$0x1]
        %v1569 = vlaneseq
        %v1570 = vshrl.u32 %v1569, 7
        %v1571 = vsub.s32 0, %v1570
        %v1572 = vrot.slane %v1568, %v1571
        %v1574 = vsel %vm502, %v1565, 0
        %1576 = vmatprep.subr.bf16.mxu0 0
        %1577 = vmatpush1.bf16.msra.mxu0 %v1566
        %1578 = vmatprep.subr.bf16.mxu0 0
        %1579 = vmatpush1.bf16.msra.mxu0 %v1567
        %1580 = vmatprep.subr.bf16.mxu0 0
        %1581 = vmatpush1.bf16.msra.mxu0 0
        %1582 = vmatprep.subr.bf16.mxu0 0
        %1583 = vmatpush1.bf16.msra.mxu0 0
        %1584 = vmatprep.subr.bf16.mxu0 0
        %1585 = vmatpush1.bf16.msra.mxu0 0
        %1586 = vmatprep.subr.bf16.mxu0 0
        %1587 = vmatpush1.bf16.msra.mxu0 0
        %1588 = vmatprep.subr.bf16.mxu0 0
        %1589 = vmatpush1.bf16.msra.mxu0 0
        %1590 = vmatprep.subr.bf16.mxu0 0
        %1591 = vmatpush1.bf16.msra.mxu0 0
        %1592 = vmatprep.subr.bf16.mxu0 0
        %1593 = vmatpush1.bf16.msra.mxu0 0
        %1594 = vmatprep.subr.bf16.mxu0 0
        %1595 = vmatpush1.bf16.msra.mxu0 0
        %1596 = vmatprep.subr.bf16.mxu0 0
        %1597 = vmatpush1.bf16.msra.mxu0 0
        %1598 = vmatprep.subr.bf16.mxu0 0
        %1599 = vmatpush1.bf16.msra.mxu0 0
        %1600 = vmatprep.subr.bf16.mxu0 0
        %1601 = vmatpush1.bf16.msra.mxu0 0
        %1602 = vmatprep.subr.bf16.mxu0 0
        %1603 = vmatpush1.bf16.msra.mxu0 0
        %1604 = vmatprep.subr.bf16.mxu0 0
        %1605 = vmatpush1.bf16.msra.mxu0 0
        %1606 = vmatprep.subr.bf16.mxu0 0
        %1607 = vmatpush1.bf16.msra.mxu0 0
        %1608 = vmatprep.mubr.bf16.mxu0 0
        %1609 = vmatmul.mubr.bf16.gmra.mrb[0].mxu0 %v1574
        %v1610 = vpop.f32.mrb[0].mxu0
        %v1611 = vadd.f32 %v1572, %v1610
        %v1612 = vpop.f32.mrb[0].mxu0
        %v1613 = vpop.f32.mrb[0].mxu0
        %v1614 = vpop.f32.mrb[0].mxu0
        %1615 = vdwg.mxu0
        %v1616 = vmax.f32 %v1611, 0.0
        %v1617 = vld [vmem:[#allocation5 + $0x158] sm:$0xff]
        %v1618 = vld [vmem:[#allocation5 + $0x160] sm:$0xff]
        %v1619 = vld [vmem:[#allocation5 + $0x168] sm:$0xff]
        %v1620 = vld [vmem:[#allocation5 + $0x170] sm:$0xff]
        %v1621 = vpack.c.bf16 %v1616, %v1616
        %v1622 = vpack.c.bf16 %v1618, %v1617
        %v1623 = vpack.c.bf16 %v1620, %v1619
        %v1624 = vld [vmem:[#allocation5 + $0x178] sm:$0x1]
        %v1625 = vlaneseq
        %v1626 = vshrl.u32 %v1625, 7
        %v1627 = vsub.s32 0, %v1626
        %v1628 = vrot.slane %v1624, %v1627
        %v1630 = vsel %vm502, %v1621, 0
        %1632 = vmatprep.subr.bf16.mxu0 0
        %1633 = vmatpush1.bf16.msra.mxu0 %v1622
        %1634 = vmatprep.subr.bf16.mxu0 0
        %1635 = vmatpush1.bf16.msra.mxu0 %v1623
        %1636 = vmatprep.subr.bf16.mxu0 0
        %1637 = vmatpush1.bf16.msra.mxu0 0
        %1638 = vmatprep.subr.bf16.mxu0 0
        %1639 = vmatpush1.bf16.msra.mxu0 0
        %1640 = vmatprep.subr.bf16.mxu0 0
        %1641 = vmatpush1.bf16.msra.mxu0 0
        %1642 = vmatprep.subr.bf16.mxu0 0
        %1643 = vmatpush1.bf16.msra.mxu0 0
        %1644 = vmatprep.subr.bf16.mxu0 0
        %1645 = vmatpush1.bf16.msra.mxu0 0
        %1646 = vmatprep.subr.bf16.mxu0 0
        %1647 = vmatpush1.bf16.msra.mxu0 0
        %1648 = vmatprep.subr.bf16.mxu0 0
        %1649 = vmatpush1.bf16.msra.mxu0 0
        %1650 = vmatprep.subr.bf16.mxu0 0
        %1651 = vmatpush1.bf16.msra.mxu0 0
        %1652 = vmatprep.subr.bf16.mxu0 0
        %1653 = vmatpush1.bf16.msra.mxu0 0
        %1654 = vmatprep.subr.bf16.mxu0 0
        %1655 = vmatpush1.bf16.msra.mxu0 0
        %1656 = vmatprep.subr.bf16.mxu0 0
        %1657 = vmatpush1.bf16.msra.mxu0 0
        %1658 = vmatprep.subr.bf16.mxu0 0
        %1659 = vmatpush1.bf16.msra.mxu0 0
        %1660 = vmatprep.subr.bf16.mxu0 0
        %1661 = vmatpush1.bf16.msra.mxu0 0
        %1662 = vmatprep.subr.bf16.mxu0 0
        %1663 = vmatpush1.bf16.msra.mxu0 0
        %1664 = vmatprep.mubr.bf16.mxu0 0
        %1665 = vmatmul.mubr.bf16.gmra.mrb[0].mxu0 %v1630
        %v1666 = vpop.f32.mrb[0].mxu0
        %v1667 = vadd.f32 %v1628, %v1666
        %v1668 = vpop.f32.mrb[0].mxu0
        %v1669 = vpop.f32.mrb[0].mxu0
        %v1670 = vpop.f32.mrb[0].mxu0
        %1671 = vdwg.mxu0
        %v1672 = vmax.f32 %v1667, 0.0
        %v1673 = vld [vmem:[#allocation5 + $0x180] sm:$0xff]
        %v1674 = vld [vmem:[#allocation5 + $0x188] sm:$0xff]
        %v1675 = vpack.c.bf16 %v1672, %v1672
        %v1676 = vpack.c.bf16 %v1674, %v1673
        %v1677 = vld [vmem:[#allocation5 + $0x190] sm:$0x1]
        %v1678 = vlaneseq
        %v1679 = vshrl.u32 %v1678, 7
        %v1680 = vsub.s32 0, %v1679
        %v1681 = vrot.slane %v1677, %v1680
        %vm1682 = vcmask 130048
        %v1684 = vsel %vm1682, %v1675, 0
        %1686 = vmatprep.subr.bf16.mxu0 0
        %1687 = vmatpush1.bf16.msra.mxu0 %v1676
        %1688 = vmatprep.subr.bf16.mxu0 0
        %1689 = vmatpush1.bf16.msra.mxu0 0
        %1690 = vmatprep.subr.bf16.mxu0 0
        %1691 = vmatpush1.bf16.msra.mxu0 0
        %1692 = vmatprep.subr.bf16.mxu0 0
        %1693 = vmatpush1.bf16.msra.mxu0 0
        %1694 = vmatprep.subr.bf16.mxu0 0
        %1695 = vmatpush1.bf16.msra.mxu0 0
        %1696 = vmatprep.subr.bf16.mxu0 0
        %1697 = vmatpush1.bf16.msra.mxu0 0
        %1698 = vmatprep.subr.bf16.mxu0 0
        %1699 = vmatpush1.bf16.msra.mxu0 0
        %1700 = vmatprep.subr.bf16.mxu0 0
        %1701 = vmatpush1.bf16.msra.mxu0 0
        %1702 = vmatprep.subr.bf16.mxu0 0
        %1703 = vmatpush1.bf16.msra.mxu0 0
        %1704 = vmatprep.subr.bf16.mxu0 0
        %1705 = vmatpush1.bf16.msra.mxu0 0
        %1706 = vmatprep.subr.bf16.mxu0 0
        %1707 = vmatpush1.bf16.msra.mxu0 0
        %1708 = vmatprep.subr.bf16.mxu0 0
        %1709 = vmatpush1.bf16.msra.mxu0 0
        %1710 = vmatprep.subr.bf16.mxu0 0
        %1711 = vmatpush1.bf16.msra.mxu0 0
        %1712 = vmatprep.subr.bf16.mxu0 0
        %1713 = vmatpush1.bf16.msra.mxu0 0
        %1714 = vmatprep.subr.bf16.mxu0 0
        %1715 = vmatpush1.bf16.msra.mxu0 0
        %1716 = vmatprep.subr.bf16.mxu0 0
        %1717 = vmatpush1.bf16.msra.mxu0 0
        %1718 = vmatprep.mubr.bf16.mxu0 0
        %1719 = vmatmul.mubr.bf16.gmra.mrb[0].mxu0 %v1684
        %v1720 = vpop.f32.mrb[0].mxu0
        %v1721 = vadd.f32 %v1681, %v1720
        %v1722 = vpop.f32.mrb[0].mxu0
        %v1723 = vpop.f32.mrb[0].mxu0
        %v1724 = vpop.f32.mrb[0].mxu0
        %1725 = vdwg.mxu0
        %1726 = vst [vmem:[%s176] sm:$0x3] %v1721
        %s1727 = sand.u32 %s75, 1
        %s1728 = scalar_lea.sflag [#allocation4], %s1727
        %s1729 = sand.u32 %s75, 1
        %s1730 = smul.addr %s1729, 2
        %s1731 = scalar_lea.vmem [#allocation7], %s1730
        // Predicated region
        $region37: #{tpu_custom_call.1} parent=27 // pred_check
          %p1732 = pneg %p85
        $region38: #{tpu_custom_call.1} parent=27 // pred_check_branch
          %1734 = sbr.rel (%p1732) target = $region40
        $region39: #{tpu_custom_call.1} parent=27 // pred_region
          %s1736 = ssub.s32 32, 32
          %1737 = vsyncadd %s1728, %s1736
          %s1738 = smul.addr %s20, 32
          %s1739 = scalar_lea.hbm %s2, %s1738
          %s1741 = sshll.u32 %s1731, 4
          %s1742 = int_to_ptr.vmem [resolvable:$true] %s1741
          %1744 = dma.vmem_to_hbm [thread:$0]  %s1742, 32, %s1739, %s1728
        $region40: #{tpu_custom_call.1} parent=27 // pred_fallthru
          _
      $region28: #{tpu_custom_call.1} parent=5 // pred_fallthru
        _
      %p1745 = scmp.le.s32.totalorder 2, %s15
      // Predicated region
      $region41: #{tpu_custom_call.1} parent=5 // pred_check
        %p1746 = pneg %p1745
      $region42: #{tpu_custom_call.1} parent=5 // pred_check_branch
        %1748 = sbr.rel (%p1746) target = $region44
      $region43: #{tpu_custom_call.1} parent=5 // pred_region
        %s1749 = ssub.s32 %s15, 2
        // Predicated region
        $region45: #{tpu_custom_call.1} parent=43 // pred_check
          %p1750 = pneg %p91
        $region46: #{tpu_custom_call.1} parent=43 // pred_check_branch
          %1752 = sbr.rel (%p1750) target = $region48
        $region47: #{tpu_custom_call.1} parent=43 // pred_region
          %s1753 = sand.u32 %s76, 1
          %s1754 = scalar_lea.sflag [#allocation4], %s1753
          %s1755 = sand.u32 %s76, 1
          %s1756 = smul.addr %s1755, 2
          %s1757 = scalar_lea.vmem [#allocation7], %s1756
          %1758 = dma.done %s1754, 32
        $region48: #{tpu_custom_call.1} parent=43 // pred_fallthru
          _
      $region44: #{tpu_custom_call.1} parent=5 // pred_fallthru
        _
    $region6: #{tpu_custom_call.1} parent=1 // loop_footer
      %s19 = sadd.s32 1, %s15
    $region7: #{tpu_custom_call.1} parent=1 // loop_footer_branch
      %14 = sbr.rel target = $region3
    $region8: #{tpu_custom_call.1} parent=1 // loop_exit
      _
    %1759 = vsyncpa [#allocation3], 1
    %s1760 = scalar_lea.sflag [#allocation3], 1
    %1761 = vsyncpa %s1760, 1
    %1762 = vsyncpa [#allocation6], 1
    %1763 = vsyncpa [#allocation4], 1
    %s1764 = scalar_lea.sflag [#allocation4], 1
    %1765 = vsyncpa %s1764, 1

</llo_original>
